<compile_context>
chip_gen: v7x
topology: tpu7x:2x2x1
jax: 0.10.0
libtpu: 0.0.40
codegen_flags: <defaults>
</compile_context>

<pallas_src>
import functools

import jax
import jax.numpy as jnp
from jax.experimental import pallas as pl
from jax.experimental.pallas import tpu as pltpu

_LN_EPS = 1e-5


def _round_up(x, m):
    return ((x + m - 1) // m) * m


def _make_fused_mlp_kernel(num_layers):
    """Kernel: refs = (x, w0, bgb0, w1, bgb1, ..., out).

    Per layer:  y = relu(layernorm(h @ W + b) * gamma + beta)
    h/W are bf16 on the MXU with f32 accumulation; LN math is f32.
    Dropout is identity (inference).
    """

    def kernel(*refs):
        x_ref = refs[0]
        o_ref = refs[-1]
        layer_refs = refs[1:-1]

        h = x_ref[...]                                     # bf16 activations
        for l in range(num_layers):
            w_ref = layer_refs[2 * l]                      # (Din_l, Dout_l) bf16
            p_ref = layer_refs[2 * l + 1]                  # (3, Dout_l) f32: b/gamma/beta

            # Linear on the MXU, f32 accumulation.
            y = jnp.dot(h, w_ref[...], preferred_element_type=jnp.float32)
            y = y + p_ref[0:1, :]                          # bias (f32)

            # LayerNorm over features (biased variance, eps=1e-5), all f32.
            mean = jnp.mean(y, axis=-1, keepdims=True)
            centered = y - mean
            var = jnp.mean(centered * centered, axis=-1, keepdims=True)
            y = centered * jax.lax.rsqrt(var + _LN_EPS)
            y = y * p_ref[1:2, :] + p_ref[2:3, :]          # gamma / beta

            # ReLU; dropout = identity at inference.
            y = jnp.maximum(y, 0.0)

            # Feed the next MXU in bf16; keep the last layer in f32 until store.
            h = y.astype(jnp.bfloat16) if (l + 1) < num_layers else y

        o_ref[...] = h.astype(o_ref.dtype)

    return kernel


def _estimate_vmem_bytes(tb, in_dim, layer_dims):
    """Rough resident-VMEM estimate (double-buffered blocks + f32 temporaries)."""
    bf16, f32 = 2, 4
    total = 2 * tb * in_dim * bf16                 # x tile (double-buffered)
    total += 2 * tb * layer_dims[-1] * bf16        # out tile (double-buffered)
    prev = in_dim
    for d in layer_dims:
        total += 2 * prev * d * bf16               # weight block
        total += 2 * 8 * d * f32                   # packed b/gamma/beta (8-sublane pad)
        total += 2 * tb * d * f32                  # f32 LN temporaries
        prev = d
    return total


def fused_text_mlp(x, params, *, tb=128):
    """x: [B, text_embed_dim] bf16; params: ((w, bgb), ...) per layer."""
    B, in_dim = x.shape
    num_layers = len(params)
    layer_dims = [w.shape[1] for (w, _) in params]
    out_dim = layer_dims[-1]

    # Batch tile: multiple of 16 sublanes (bf16), pad B up to a tile multiple.
    TB = min(tb, _round_up(B, 16))
    B_pad = _round_up(B, TB)
    if B_pad != B:
        x = jnp.pad(x, ((0, B_pad - B), (0, 0)))

    grid = (B_pad // TB,)

    in_specs = [pl.BlockSpec((TB, in_dim), lambda i: (i, 0))]
    flat_inputs = [x]
    for (w, bgb) in params:
        din_l, dout_l = w.shape
        # Full blocks with constant index_map -> VMEM-resident across batch tiles.
        in_specs.append(pl.BlockSpec((din_l, dout_l), lambda i: (0, 0)))
        in_specs.append(pl.BlockSpec((3, dout_l), lambda i: (0, 0)))
        flat_inputs.extend([w, bgb])

    out_spec = pl.BlockSpec((TB, out_dim), lambda i: (i, 0))

    # Explicit VMEM budget; cap well below v7x's 64 MiB physical VMEM.
    vmem_limit = min(max(2 * _estimate_vmem_bytes(TB, in_dim, layer_dims),
                         32 * 1024 * 1024),
                     48 * 1024 * 1024)

    out = pl.pallas_call(
        _make_fused_mlp_kernel(num_layers),
        out_shape=jax.ShapeDtypeStruct((B_pad, out_dim), x.dtype),
        grid_spec=pltpu.PrefetchScalarGridSpec(
            num_scalar_prefetch=0,
            grid=grid,
            in_specs=in_specs,
            out_specs=out_spec,
        ),
        compiler_params=pltpu.CompilerParams(
            dimension_semantics=("parallel",),      # batch tiles are independent
            vmem_limit_bytes=vmem_limit,
        ),
    )(*flat_inputs)

    return out[:B] if B_pad != B else out


@jax.jit
def text_embed_encoder_forward(x, params):
    return fused_text_mlp(x, params)


def init_text_embed_encoder_params(key, in_dim, layer_dims):
    """Synthetic params matching nn.Linear / nn.LayerNorm shapes.

    Per layer: (w [Din, Dout] bf16, packed [3, Dout] f32 = bias/gamma/beta).
    w is stored transposed vs. torch (x @ W  ==  x @ W_torch.T).
    """
    params = []
    prev = in_dim
    for d in layer_dims:
        key, kw, kb = jax.random.split(key, 3)
        scale = 1.0 / float(prev) ** 0.5
        w = jax.random.uniform(kw, (prev, d), jnp.float32, -scale, scale)
        b = jax.random.uniform(kb, (1, d), jnp.float32, -scale, scale)
        gamma = jnp.ones((1, d), jnp.float32)
        beta = jnp.zeros((1, d), jnp.float32)
        packed = jnp.concatenate([b, gamma, beta], axis=0)       # (3, d) f32
        params.append((w.astype(jnp.bfloat16), packed))
        prev = d
    return tuple(params)


def _reference_forward(x, params):
    """Pure-JAX (f32) reference using the same bf16-stored weights/activations."""
    h = x.astype(jnp.float32)
    for (w, packed) in params:
        y = h @ w.astype(jnp.float32) + packed[0:1]
        mean = jnp.mean(y, axis=-1, keepdims=True)
        var = jnp.mean((y - mean) ** 2, axis=-1, keepdims=True)
        y = (y - mean) / jnp.sqrt(var + _LN_EPS)
        y = y * packed[1:2] + packed[2:3]
        h = jnp.maximum(y, 0.0)
    return h


if __name__ == "__main__":
    key = jax.random.PRNGKey(0)
    k_x, k_p = jax.random.split(key)

    # Lane-dense, still-small shapes: feature dims multiples of 128,
    # batch big enough that the batch-tiled grid actually pipelines (grid=(2,)).
    batch = 256
    text_embed_dim = 256           # args['text_embed_dim']
    layer_dims = [512, 256]        # args['layers']

    x = jax.random.normal(k_x, (batch, text_embed_dim), jnp.float32).astype(jnp.bfloat16)
    params = init_text_embed_encoder_params(k_p, text_embed_dim, layer_dims)

    out = text_embed_encoder_forward(x, params)
    out = jax.block_until_ready(out)

    ref = _reference_forward(x, params)
    assert out.shape == (batch, layer_dims[-1])
    out_f32 = out.astype(jnp.float32)
    # bf16 inter-layer activation + bf16 output store => loose-ish tolerance.
    assert jnp.allclose(out_f32, ref, atol=5e-2, rtol=5e-2), (
        f"mismatch vs reference (max abs err {jnp.max(jnp.abs(out_f32 - ref))})")

    print("KERNEL_OK")
</pallas_src>

<mosaic_0001>
module attributes {stable_mosaic.version = 11 : i64} {
  func.func @kernel(%arg0: i32, %arg1: memref<128x256xbf16, #tpu.memory_space<vmem>>, %arg2: memref<256x512xbf16, #tpu.memory_space<vmem>>, %arg3: memref<3x512xf32, #tpu.memory_space<vmem>>, %arg4: memref<512x256xbf16, #tpu.memory_space<vmem>>, %arg5: memref<3x256xf32, #tpu.memory_space<vmem>>, %arg6: memref<128x256xbf16, #tpu.memory_space<vmem>>) attributes {dimension_semantics = [#tpu.dimension_semantics<parallel>], iteration_bounds = array<i64: 2>, scalar_prefetch = 0 : i64, scratch_operands = 0 : i64, tpu.core_type = #tpu.core_type<tc>, window_params = [{transform_indices = @transform_0, window_bounds = array<i64: 128, 256>}, {pipeline_mode = #tpu.pipeline_mode<synchronous>, transform_indices = @transform_1, window_bounds = array<i64: 256, 512>}, {pipeline_mode = #tpu.pipeline_mode<synchronous>, transform_indices = @transform_2, window_bounds = array<i64: 3, 512>}, {pipeline_mode = #tpu.pipeline_mode<synchronous>, transform_indices = @transform_3, window_bounds = array<i64: 512, 256>}, {pipeline_mode = #tpu.pipeline_mode<synchronous>, transform_indices = @transform_4, window_bounds = array<i64: 3, 256>}, {transform_indices = @transform_5, window_bounds = array<i64: 128, 256>}]} {
    %c0 = arith.constant 0 : index
    %c0_0 = arith.constant 0 : index
    %0 = vector.load %arg1[%c0, %c0_0] : memref<128x256xbf16, #tpu.memory_space<vmem>>, vector<128x256xbf16>
    %c0_1 = arith.constant 0 : index
    %c0_2 = arith.constant 0 : index
    %1 = vector.load %arg2[%c0_1, %c0_2] : memref<256x512xbf16, #tpu.memory_space<vmem>>, vector<256x512xbf16>
    %cst = arith.constant dense<0.000000e+00> : vector<128x512xf32>
    %2 = tpu.matmul %0, %1, %cst {dimension_numbers = #tpu.dot_dimension_numbers<[1], [0], [0], [1], [0, 0, 1, 1], [], []>} : vector<128x256xbf16>, vector<256x512xbf16>, vector<128x512xf32> -> vector<128x512xf32>
    %c0_3 = arith.constant 0 : index
    %c0_4 = arith.constant 0 : index
    %3 = vector.load %arg3[%c0_3, %c0_4] : memref<3x512xf32, #tpu.memory_space<vmem>>, vector<1x512xf32>
    %4 = vector.broadcast %3 : vector<1x512xf32> to vector<128x512xf32>
    %5 = arith.addf %2, %4 : vector<128x512xf32>
    %cst_5 = arith.constant dense<0.000000e+00> : vector<128xf32>
    %6 = vector.multi_reduction <add>, %5, %cst_5 [1] : vector<128x512xf32> to vector<128xf32>
    %7 = vector.shape_cast %6 : vector<128xf32> to vector<128x1xf32>
    %cst_6 = arith.constant 5.120000e+02 : f32
    %8 = vector.broadcast %cst_6 : f32 to vector<128x1xf32>
    %9 = arith.divf %7, %8 : vector<128x1xf32>
    %10 = vector.broadcast %9 : vector<128x1xf32> to vector<128x512xf32>
    %11 = arith.subf %5, %10 : vector<128x512xf32>
    %12 = arith.mulf %11, %11 : vector<128x512xf32>
    %cst_7 = arith.constant dense<0.000000e+00> : vector<128xf32>
    %13 = vector.multi_reduction <add>, %12, %cst_7 [1] : vector<128x512xf32> to vector<128xf32>
    %14 = vector.shape_cast %13 : vector<128xf32> to vector<128x1xf32>
    %cst_8 = arith.constant 5.120000e+02 : f32
    %15 = vector.broadcast %cst_8 : f32 to vector<128x1xf32>
    %16 = arith.divf %14, %15 : vector<128x1xf32>
    %cst_9 = arith.constant 9.99999974E-6 : f32
    %17 = vector.broadcast %cst_9 : f32 to vector<128x1xf32>
    %18 = arith.addf %16, %17 : vector<128x1xf32>
    %19 = math.rsqrt %18 : vector<128x1xf32>
    %20 = vector.broadcast %19 : vector<128x1xf32> to vector<128x512xf32>
    %21 = arith.mulf %11, %20 : vector<128x512xf32>
    %c1 = arith.constant 1 : index
    %c0_10 = arith.constant 0 : index
    %22 = vector.load %arg3[%c1, %c0_10] : memref<3x512xf32, #tpu.memory_space<vmem>>, vector<1x512xf32>
    %23 = vector.broadcast %22 : vector<1x512xf32> to vector<128x512xf32>
    %24 = arith.mulf %21, %23 : vector<128x512xf32>
    %c2 = arith.constant 2 : index
    %c0_11 = arith.constant 0 : index
    %25 = vector.load %arg3[%c2, %c0_11] : memref<3x512xf32, #tpu.memory_space<vmem>>, vector<1x512xf32>
    %26 = vector.broadcast %25 : vector<1x512xf32> to vector<128x512xf32>
    %27 = arith.addf %24, %26 : vector<128x512xf32>
    %cst_12 = arith.constant 0.000000e+00 : f32
    %28 = vector.broadcast %cst_12 : f32 to vector<128x512xf32>
    %29 = arith.maximumf %27, %28 : vector<128x512xf32>
    %30 = arith.truncf %29 : vector<128x512xf32> to vector<128x512xbf16>
    %c0_13 = arith.constant 0 : index
    %c0_14 = arith.constant 0 : index
    %31 = vector.load %arg4[%c0_13, %c0_14] : memref<512x256xbf16, #tpu.memory_space<vmem>>, vector<512x256xbf16>
    %cst_15 = arith.constant dense<0.000000e+00> : vector<128x256xf32>
    %32 = tpu.matmul %30, %31, %cst_15 {dimension_numbers = #tpu.dot_dimension_numbers<[1], [0], [0], [1], [0, 0, 1, 1], [], []>} : vector<128x512xbf16>, vector<512x256xbf16>, vector<128x256xf32> -> vector<128x256xf32>
    %c0_16 = arith.constant 0 : index
    %c0_17 = arith.constant 0 : index
    %33 = vector.load %arg5[%c0_16, %c0_17] : memref<3x256xf32, #tpu.memory_space<vmem>>, vector<1x256xf32>
    %34 = vector.broadcast %33 : vector<1x256xf32> to vector<128x256xf32>
    %35 = arith.addf %32, %34 : vector<128x256xf32>
    %cst_18 = arith.constant dense<0.000000e+00> : vector<128xf32>
    %36 = vector.multi_reduction <add>, %35, %cst_18 [1] : vector<128x256xf32> to vector<128xf32>
    %37 = vector.shape_cast %36 : vector<128xf32> to vector<128x1xf32>
    %cst_19 = arith.constant 2.560000e+02 : f32
    %38 = vector.broadcast %cst_19 : f32 to vector<128x1xf32>
    %39 = arith.divf %37, %38 : vector<128x1xf32>
    %40 = vector.broadcast %39 : vector<128x1xf32> to vector<128x256xf32>
    %41 = arith.subf %35, %40 : vector<128x256xf32>
    %42 = arith.mulf %41, %41 : vector<128x256xf32>
    %cst_20 = arith.constant dense<0.000000e+00> : vector<128xf32>
    %43 = vector.multi_reduction <add>, %42, %cst_20 [1] : vector<128x256xf32> to vector<128xf32>
    %44 = vector.shape_cast %43 : vector<128xf32> to vector<128x1xf32>
    %cst_21 = arith.constant 2.560000e+02 : f32
    %45 = vector.broadcast %cst_21 : f32 to vector<128x1xf32>
    %46 = arith.divf %44, %45 : vector<128x1xf32>
    %cst_22 = arith.constant 9.99999974E-6 : f32
    %47 = vector.broadcast %cst_22 : f32 to vector<128x1xf32>
    %48 = arith.addf %46, %47 : vector<128x1xf32>
    %49 = math.rsqrt %48 : vector<128x1xf32>
    %50 = vector.broadcast %49 : vector<128x1xf32> to vector<128x256xf32>
    %51 = arith.mulf %41, %50 : vector<128x256xf32>
    %c1_23 = arith.constant 1 : index
    %c0_24 = arith.constant 0 : index
    %52 = vector.load %arg5[%c1_23, %c0_24] : memref<3x256xf32, #tpu.memory_space<vmem>>, vector<1x256xf32>
    %53 = vector.broadcast %52 : vector<1x256xf32> to vector<128x256xf32>
    %54 = arith.mulf %51, %53 : vector<128x256xf32>
    %c2_25 = arith.constant 2 : index
    %c0_26 = arith.constant 0 : index
    %55 = vector.load %arg5[%c2_25, %c0_26] : memref<3x256xf32, #tpu.memory_space<vmem>>, vector<1x256xf32>
    %56 = vector.broadcast %55 : vector<1x256xf32> to vector<128x256xf32>
    %57 = arith.addf %54, %56 : vector<128x256xf32>
    %cst_27 = arith.constant 0.000000e+00 : f32
    %58 = vector.broadcast %cst_27 : f32 to vector<128x256xf32>
    %59 = arith.maximumf %57, %58 : vector<128x256xf32>
    %60 = arith.truncf %59 : vector<128x256xf32> to vector<128x256xbf16>
    %c0_28 = arith.constant 0 : index
    %c0_29 = arith.constant 0 : index
    %61 = vector.load %arg6[%c0_28, %c0_29] : memref<128x256xbf16, #tpu.memory_space<vmem>>, vector<128x256xbf16>
    tpu.vector_store %arg6[%c0_28, %c0_29], %60 {strides = array<i32>} : memref<128x256xbf16, #tpu.memory_space<vmem>>, vector<128x256xbf16>,
    return
  }
  func.func @transform_0(%arg0: i32) -> (i32, i32) {
    %c0_i32 = arith.constant 0 : i32
    %c0_i32_0 = arith.constant 0 : i32
    return %arg0, %c0_i32 : i32, i32
  }
  func.func @transform_1(%arg0: i32) -> (i32, i32) {
    %c0_i32 = arith.constant 0 : i32
    %c0_i32_0 = arith.constant 0 : i32
    %c0_i32_1 = arith.constant 0 : i32
    return %c0_i32, %c0_i32_0 : i32, i32
  }
  func.func @transform_2(%arg0: i32) -> (i32, i32) {
    %c0_i32 = arith.constant 0 : i32
    %c0_i32_0 = arith.constant 0 : i32
    %c0_i32_1 = arith.constant 0 : i32
    return %c0_i32, %c0_i32_0 : i32, i32
  }
  func.func @transform_3(%arg0: i32) -> (i32, i32) {
    %c0_i32 = arith.constant 0 : i32
    %c0_i32_0 = arith.constant 0 : i32
    %c0_i32_1 = arith.constant 0 : i32
    return %c0_i32, %c0_i32_0 : i32, i32
  }
  func.func @transform_4(%arg0: i32) -> (i32, i32) {
    %c0_i32 = arith.constant 0 : i32
    %c0_i32_0 = arith.constant 0 : i32
    %c0_i32_1 = arith.constant 0 : i32
    return %c0_i32, %c0_i32_0 : i32, i32
  }
  func.func @transform_5(%arg0: i32) -> (i32, i32) {
    %c0_i32 = arith.constant 0 : i32
    %c0_i32_0 = arith.constant 0 : i32
    return %arg0, %c0_i32 : i32, i32
  }
}

</mosaic_0001>

<llo_original>
// kernel: text_embed_encoder_forward.1
$region0: #{text_embed_encoder_forward.1}
  #allocation0 [shape = 'u32[]', space=smem, size = 0x4, offset = 0x4, fixed_abs, tag = 'smem constant byte address 0x4 - core index']
  #allocation1 [shape = 'u32[144,128]{1,0:T(1,128)}', space=vmem, size = 0x12000, scoped, tag = 'internal scratch']
  %s0 = inlined_call_operand.hbm [shape: bf16[256,256], index: 0, kind: input, shape index: {}]
  %s1 = inlined_call_operand.hbm [shape: bf16[256,512], index: 1, kind: input, shape index: {}]
  %s2 = inlined_call_operand.hbm [shape: f32[3,512], index: 2, kind: input, shape index: {}]
  %s3 = inlined_call_operand.hbm [shape: bf16[512,256], index: 3, kind: input, shape index: {}]
  %s4 = inlined_call_operand.vmem [shape: f32[3,256], index: 4, kind: input, shape index: {}]
  %s5 = inlined_call_operand.hbm [shape: bf16[256,256], index: 5, kind: output, shape index: {}]
  %s6 = sld [smem:[#allocation0]]
  $region69: #{text_embed_encoder_forward.1} parent=0
    _
  %s8 = ssub.s32 1, %s6
  %s9 = scalar_select 0, %s8, %s6
  $region1: #{text_embed_encoder_forward.1} parent=0
    #allocation2 [shape = 'u8[131072]{0}', space=vmem, size = 0x20000, scoped, tag = 'input window, operand 0']
    #allocation3 [shape = 's32[2]{0}', space=sflag, size = 0x8, scoped, tag = 'scoped memory for text_embed_encoder_forward.1']
    #allocation4 [shape = 's32[2]{0}', space=sflag, size = 0x8, scoped, tag = 'scoped memory for text_embed_encoder_forward.1']
    #allocation5 [shape = 'u8[262144]{0}', space=vmem, size = 0x40000, scoped, tag = 'input window, operand 1, single buffered']
    #allocation6 [shape = 's32[1]{0}', space=sflag, size = 0x4, scoped, tag = 'scoped memory for text_embed_encoder_forward.1']
    #allocation7 [shape = 'u8[8192]{0}', space=vmem, size = 0x2000, scoped, tag = 'input window, operand 2, single buffered']
    #allocation8 [shape = 'u8[262144]{0}', space=vmem, size = 0x40000, scoped, tag = 'input window, operand 3, single buffered']
    #allocation9 [shape = 's32[1]{0}', space=sflag, size = 0x4, scoped, tag = 'scoped memory for text_embed_encoder_forward.1']
    #allocation10 [shape = 'u8[131072]{0}', space=vmem, size = 0x20000, scoped, tag = 'output window, operand 0']
    %10 = vsyncpa [#allocation3], 0
    %s11 = scalar_lea.sflag [#allocation3], 1
    %12 = vsyncpa %s11, 0
    %13 = vsyncpa [#allocation6], 0
    %14 = vsyncpa [#allocation9], 0
    %15 = vsyncpa [#allocation4], 0
    %s16 = scalar_lea.sflag [#allocation4], 1
    %17 = vsyncpa %s16, 0
    loop: start=0, step=1, limit=4
    $region2: #{text_embed_encoder_forward.1} parent=1 // loop_pre_header
      _
    $region3: #{text_embed_encoder_forward.1} parent=1 // loop_header
      %s19 = sphi 0, %s23
      %p20 = scmp.ge.s32.totalorder %s19, 4
      %s29 = sphi 0, %s31
      %s32 = sphi 0, %s29
      %s33 = sphi 0, %s32
      %s49 = sphi 0, %s33
      %s53 = sphi 0, %s53
      %s55 = sphi 0, %s53
      %s56 = sphi 0, %s55
      %s70 = sphi 0, %s56
      %s74 = sphi 0, %s74
      %s76 = sphi 0, %s74
      %s77 = sphi 0, %s76
      %s91 = sphi 0, %s77
      %s95 = sphi 0, %s95
      %s97 = sphi 0, %s95
      %s98 = sphi 0, %s97
      %s112 = sphi 0, %s98
      %s116 = sphi 0, %s116
      %s118 = sphi 0, %s116
      %s119 = sphi 0, %s118
      %s133 = sphi 0, %s119
      %s139 = sphi 0, %s141
      %s142 = sphi 0, %s139
      %s143 = sphi 0, %s142
      %s159 = sphi 0, %s143
    $region4: #{text_embed_encoder_forward.1} parent=1 // loop_header_branch
      %22 = sbr.rel (%p20) target = $region8
    $region5: #{text_embed_encoder_forward.1} parent=1 // loop_body
      %s24 = ssub.s32 %s19, 1
      %s25 = ssub.s32 %s19, 2
      %s26 = sadd.s32 %s19, 1
      %s27 = ssub.s32 %s19, %s26
      %p28 = scmp.eq.s32.totalorder %s27, 0
      %s30 = sadd.s32 %s29, 1
      %s31 = scalar_select %p28, %s29, %s30
      %p34 = pneg %p28
      %p35 = scmp.eq.s32.totalorder %s19, 1
      %p36 = por %p34, %p35
      %p37 = scmp.ne.s32.totalorder %s29, %s32
      %p38 = scmp.eq.s32.totalorder %s19, 0
      %p39 = por %p37, %p38
      %p40 = scmp.ne.s32.totalorder %s29, %s32
      %p41 = scmp.eq.s32.totalorder %s24, 1
      %p42 = por %p40, %p41
      %p43 = scmp.ne.s32.totalorder %s32, %s33
      %p44 = scmp.eq.s32.totalorder %s24, 0
      %p45 = por %p43, %p44
      %p46 = scmp.ne.s32.totalorder %s32, %s33
      %p47 = scmp.eq.s32.totalorder %s25, 1
      %p48 = por %p46, %p47
      %p50 = scmp.ne.s32.totalorder %s33, %s49
      %p51 = scmp.eq.s32.totalorder %s25, 0
      %p52 = por %p50, %p51
      %s54 = sadd.s32 %s53, 1
      %p57 = scmp.eq.s32.totalorder %s19, 1
      %p58 = scmp.ne.s32.totalorder %s53, %s55
      %p59 = scmp.eq.s32.totalorder %s19, 0
      %p60 = por %p58, %p59
      %p61 = scmp.ne.s32.totalorder %s53, %s55
      %p62 = scmp.eq.s32.totalorder %s24, 1
      %p63 = por %p61, %p62
      %p64 = scmp.ne.s32.totalorder %s55, %s56
      %p65 = scmp.eq.s32.totalorder %s24, 0
      %p66 = por %p64, %p65
      %p67 = scmp.ne.s32.totalorder %s55, %s56
      %p68 = scmp.eq.s32.totalorder %s25, 1
      %p69 = por %p67, %p68
      %p71 = scmp.ne.s32.totalorder %s56, %s70
      %p72 = scmp.eq.s32.totalorder %s25, 0
      %p73 = por %p71, %p72
      %s75 = sadd.s32 %s74, 1
      %p78 = scmp.eq.s32.totalorder %s19, 1
      %p79 = scmp.ne.s32.totalorder %s74, %s76
      %p80 = scmp.eq.s32.totalorder %s19, 0
      %p81 = por %p79, %p80
      %p82 = scmp.ne.s32.totalorder %s74, %s76
      %p83 = scmp.eq.s32.totalorder %s24, 1
      %p84 = por %p82, %p83
      %p85 = scmp.ne.s32.totalorder %s76, %s77
      %p86 = scmp.eq.s32.totalorder %s24, 0
      %p87 = por %p85, %p86
      %p88 = scmp.ne.s32.totalorder %s76, %s77
      %p89 = scmp.eq.s32.totalorder %s25, 1
      %p90 = por %p88, %p89
      %p92 = scmp.ne.s32.totalorder %s77, %s91
      %p93 = scmp.eq.s32.totalorder %s25, 0
      %p94 = por %p92, %p93
      %s96 = sadd.s32 %s95, 1
      %p99 = scmp.eq.s32.totalorder %s19, 1
      %p100 = scmp.ne.s32.totalorder %s95, %s97
      %p101 = scmp.eq.s32.totalorder %s19, 0
      %p102 = por %p100, %p101
      %p103 = scmp.ne.s32.totalorder %s95, %s97
      %p104 = scmp.eq.s32.totalorder %s24, 1
      %p105 = por %p103, %p104
      %p106 = scmp.ne.s32.totalorder %s97, %s98
      %p107 = scmp.eq.s32.totalorder %s24, 0
      %p108 = por %p106, %p107
      %p109 = scmp.ne.s32.totalorder %s97, %s98
      %p110 = scmp.eq.s32.totalorder %s25, 1
      %p111 = por %p109, %p110
      %p113 = scmp.ne.s32.totalorder %s98, %s112
      %p114 = scmp.eq.s32.totalorder %s25, 0
      %p115 = por %p113, %p114
      %s117 = sadd.s32 %s116, 1
      %p120 = scmp.eq.s32.totalorder %s19, 1
      %p121 = scmp.ne.s32.totalorder %s116, %s118
      %p122 = scmp.eq.s32.totalorder %s19, 0
      %p123 = por %p121, %p122
      %p124 = scmp.ne.s32.totalorder %s116, %s118
      %p125 = scmp.eq.s32.totalorder %s24, 1
      %p126 = por %p124, %p125
      %p127 = scmp.ne.s32.totalorder %s118, %s119
      %p128 = scmp.eq.s32.totalorder %s24, 0
      %p129 = por %p127, %p128
      %p130 = scmp.ne.s32.totalorder %s118, %s119
      %p131 = scmp.eq.s32.totalorder %s25, 1
      %p132 = por %p130, %p131
      %p134 = scmp.ne.s32.totalorder %s119, %s133
      %p135 = scmp.eq.s32.totalorder %s25, 0
      %p136 = por %p134, %p135
      %s137 = ssub.s32 %s19, %s26
      %p138 = scmp.eq.s32.totalorder %s137, 0
      %s140 = sadd.s32 %s139, 1
      %s141 = scalar_select %p138, %s139, %s140
      %p144 = pneg %p138
      %p145 = scmp.eq.s32.totalorder %s19, 1
      %p146 = por %p144, %p145
      %p147 = scmp.ne.s32.totalorder %s139, %s142
      %p148 = scmp.eq.s32.totalorder %s19, 0
      %p149 = por %p147, %p148
      %p150 = scmp.ne.s32.totalorder %s139, %s142
      %p151 = scmp.eq.s32.totalorder %s24, 1
      %p152 = por %p150, %p151
      %p153 = scmp.ne.s32.totalorder %s142, %s143
      %p154 = scmp.eq.s32.totalorder %s24, 0
      %p155 = por %p153, %p154
      %p156 = scmp.ne.s32.totalorder %s142, %s143
      %p157 = scmp.eq.s32.totalorder %s25, 1
      %p158 = por %p156, %p157
      %p160 = scmp.ne.s32.totalorder %s143, %s159
      %p161 = scmp.eq.s32.totalorder %s25, 0
      %p162 = por %p160, %p161
      %p163 = scmp.le.s32.totalorder 1, %s19
      %p164 = scmp.lt.s32.totalorder %s19, 3
      %p165 = pnand %p163, %p164
      %p166 = pneg %p165
      // Predicated region
      $region9: #{text_embed_encoder_forward.1} parent=5 // pred_check
        _
      $region10: #{text_embed_encoder_forward.1} parent=5 // pred_check_branch
        %168 = sbr.rel (%p165) target = $region12
      $region11: #{text_embed_encoder_forward.1} parent=5 // pred_region
        %s169 = ssub.s32 %s19, 1
        // Predicated region
        $region13: #{text_embed_encoder_forward.1} parent=11 // pred_check
          %p170 = pneg %p66
        $region14: #{text_embed_encoder_forward.1} parent=11 // pred_check_branch
          %172 = sbr.rel (%p170) target = $region16
        $region15: #{text_embed_encoder_forward.1} parent=11 // pred_region
          %s174 = ssub.s32 8192, 8192
          %175 = vsyncadd [#allocation6], %s174
          %s176 = sshll.u32 [#allocation5], 4
          %s177 = int_to_ptr.vmem [resolvable:$true] %s176
          %182 = dma.hbm_to_vmem [thread:$0]  %s1, 8192, %s177, [#allocation6], 256, 256, 16
        $region16: #{text_embed_encoder_forward.1} parent=11 // pred_fallthru
          _
        // Predicated region
        $region17: #{text_embed_encoder_forward.1} parent=11 // pred_check
          %p183 = pneg %p87
        $region18: #{text_embed_encoder_forward.1} parent=11 // pred_check_branch
          %185 = sbr.rel (%p183) target = $region20
        $region19: #{text_embed_encoder_forward.1} parent=11 // pred_region
          %s187 = ssub.s32 256, 256
          %188 = vsyncadd [#allocation6], %s187
          %s190 = sshll.u32 [#allocation7], 4
          %s191 = int_to_ptr.vmem [resolvable:$true] %s190
          %193 = dma.hbm_to_vmem [thread:$0]  %s2, 256, %s191, [#allocation6]
        $region20: #{text_embed_encoder_forward.1} parent=11 // pred_fallthru
          _
        // Predicated region
        $region21: #{text_embed_encoder_forward.1} parent=11 // pred_check
          %p194 = pneg %p108
        $region22: #{text_embed_encoder_forward.1} parent=11 // pred_check_branch
          %196 = sbr.rel (%p194) target = $region24
        $region23: #{text_embed_encoder_forward.1} parent=11 // pred_region
          %s198 = ssub.s32 8192, 8192
          %199 = vsyncadd [#allocation9], %s198
          %s200 = sshll.u32 [#allocation8], 4
          %s201 = int_to_ptr.vmem [resolvable:$true] %s200
          %206 = dma.hbm_to_vmem [thread:$0]  %s3, 8192, %s201, [#allocation9], 128, 128, 8
        $region24: #{text_embed_encoder_forward.1} parent=11 // pred_fallthru
          _
        // Predicated region
        $region25: #{text_embed_encoder_forward.1} parent=11 // pred_check
          %p207 = pneg %p129
        $region26: #{text_embed_encoder_forward.1} parent=11 // pred_check_branch
          %209 = sbr.rel (%p207) target = $region28
        $region27: #{text_embed_encoder_forward.1} parent=11 // pred_region
          _
        $region28: #{text_embed_encoder_forward.1} parent=11 // pred_fallthru
          _
      $region12: #{text_embed_encoder_forward.1} parent=5 // pred_fallthru
        _
      %p210 = scmp.lt.s32.totalorder %s19, 2
      // Predicated region
      $region29: #{text_embed_encoder_forward.1} parent=5 // pred_check
        %p211 = pneg %p210
      $region30: #{text_embed_encoder_forward.1} parent=5 // pred_check_branch
        %213 = sbr.rel (%p211) target = $region32
      $region31: #{text_embed_encoder_forward.1} parent=5 // pred_region
        // Predicated region
        $region33: #{text_embed_encoder_forward.1} parent=31 // pred_check
          %p214 = pneg %p39
        $region34: #{text_embed_encoder_forward.1} parent=31 // pred_check_branch
          %216 = sbr.rel (%p214) target = $region36
        $region35: #{text_embed_encoder_forward.1} parent=31 // pred_region
          %s217 = sand.u32 %s29, 1
          %s218 = scalar_lea.sflag [#allocation3], %s217
          %s219 = sand.u32 %s29, 1
          %s220 = smul.addr %s219, 128
          %s221 = scalar_lea.vmem [#allocation2], %s220
          %s222 = smul.u32 16, %s19
          %s224 = ssub.s32 2048, 2048
          %225 = vsyncadd %s218, %s224
          %s226 = smul.addr %s222, 2
          %s227 = smul.addr %s226, 64
          %s228 = scalar_lea.hbm %s0, %s227
          %s229 = sshll.u32 %s221, 4
          %s230 = int_to_ptr.vmem [resolvable:$true] %s229
          %235 = dma.hbm_to_vmem [thread:$0]  %s228, 2048, %s230, %s218, 128, 128, 8
        $region36: #{text_embed_encoder_forward.1} parent=31 // pred_fallthru
          _
      $region32: #{text_embed_encoder_forward.1} parent=5 // pred_fallthru
        _
      %p236 = scmp.le.s32.totalorder 1, %s19
      %p237 = scmp.lt.s32.totalorder %s19, 3
      %p238 = pnand %p236, %p237
      %p239 = pneg %p238
      // Predicated region
      $region37: #{text_embed_encoder_forward.1} parent=5 // pred_check
        _
      $region38: #{text_embed_encoder_forward.1} parent=5 // pred_check_branch
        %241 = sbr.rel (%p238) target = $region40
      $region39: #{text_embed_encoder_forward.1} parent=5 // pred_region
        %s242 = ssub.s32 %s19, 1
        %s243 = sand.u32 %s32, 1
        %s244 = scalar_lea.sflag [#allocation3], %s243
        %s245 = sand.u32 %s32, 1
        %s246 = smul.addr %s245, 128
        %s247 = scalar_lea.vmem [#allocation2], %s246
        // Predicated region
        $region41: #{text_embed_encoder_forward.1} parent=39 // pred_check
          %p248 = pneg %p45
        $region42: #{text_embed_encoder_forward.1} parent=39 // pred_check_branch
          %250 = sbr.rel (%p248) target = $region44
        $region43: #{text_embed_encoder_forward.1} parent=39 // pred_region
          %251 = dma.done %s244, 2048
        $region44: #{text_embed_encoder_forward.1} parent=39 // pred_fallthru
          _
        // Predicated region
        $region45: #{text_embed_encoder_forward.1} parent=39 // pred_check
          %p252 = pneg %p66
        $region46: #{text_embed_encoder_forward.1} parent=39 // pred_check_branch
          %254 = sbr.rel (%p252) target = $region48
        $region47: #{text_embed_encoder_forward.1} parent=39 // pred_region
          %255 = dma.done [#allocation6], 8192
        $region48: #{text_embed_encoder_forward.1} parent=39 // pred_fallthru
          _
        // Predicated region
        $region49: #{text_embed_encoder_forward.1} parent=39 // pred_check
          %p256 = pneg %p87
        $region50: #{text_embed_encoder_forward.1} parent=39 // pred_check_branch
          %258 = sbr.rel (%p256) target = $region52
        $region51: #{text_embed_encoder_forward.1} parent=39 // pred_region
          %259 = dma.done [#allocation6], 256
        $region52: #{text_embed_encoder_forward.1} parent=39 // pred_fallthru
          _
        // Predicated region
        $region53: #{text_embed_encoder_forward.1} parent=39 // pred_check
          %p260 = pneg %p108
        $region54: #{text_embed_encoder_forward.1} parent=39 // pred_check_branch
          %262 = sbr.rel (%p260) target = $region56
        $region55: #{text_embed_encoder_forward.1} parent=39 // pred_region
          %263 = dma.done [#allocation9], 8192
        $region56: #{text_embed_encoder_forward.1} parent=39 // pred_fallthru
          _
        %s264 = sand.u32 %s32, 1
        %s265 = scalar_lea.sflag [#allocation3], %s264
        %s266 = sand.u32 %s32, 1
        %s267 = smul.addr %s266, 128
        %s268 = scalar_lea.vmem [#allocation2], %s267
        %p269 = pneg %p45
        %p270 = pneg %p42
        %p271 = pneg %p66
        %p272 = pneg %p63
        %p273 = pneg %p87
        %p274 = pneg %p84
        %p275 = pneg %p108
        %p276 = pneg %p105
        %p277 = pneg %p129
        %p278 = pneg %p126
        %p279 = pneg %p155
        %p280 = pneg %p152
        %s281 = sand.u32 %s142, 1
        %s282 = scalar_lea.sflag [#allocation4], %s281
        %s283 = sand.u32 %s142, 1
        %s284 = smul.addr %s283, 128
        %s285 = scalar_lea.vmem [#allocation10], %s284
        %s286 = smul.u32 16, %s24
        %s287 = smul.u32 16, %s24
        %v288 = vld [vmem:[%s247] sm:$0xff]
        %v289 = vld [vmem:[%s247 + $0x8] sm:$0xff]
        %v290 = vld [vmem:[%s247 + $0x10] sm:$0xff]
        %v291 = vld [vmem:[%s247 + $0x18] sm:$0xff]
        %v292 = vld [vmem:[%s247 + $0x20] sm:$0xff]
        %v293 = vld [vmem:[%s247 + $0x28] sm:$0xff]
        %v294 = vld [vmem:[%s247 + $0x30] sm:$0xff]
        %v295 = vld [vmem:[%s247 + $0x38] sm:$0xff]
        %v296 = vld [vmem:[%s247 + $0x40] sm:$0xff]
        %v297 = vld [vmem:[%s247 + $0x48] sm:$0xff]
        %v298 = vld [vmem:[%s247 + $0x50] sm:$0xff]
        %v299 = vld [vmem:[%s247 + $0x58] sm:$0xff]
        %v300 = vld [vmem:[%s247 + $0x60] sm:$0xff]
        %v301 = vld [vmem:[%s247 + $0x68] sm:$0xff]
        %v302 = vld [vmem:[%s247 + $0x70] sm:$0xff]
        %v303 = vld [vmem:[%s247 + $0x78] sm:$0xff]
        %v304 = vld [vmem:[#allocation5] sm:$0xff]
        %v305 = vld [vmem:[#allocation5 + $0x8] sm:$0xff]
        %v306 = vld [vmem:[#allocation5 + $0x10] sm:$0xff]
        %v307 = vld [vmem:[#allocation5 + $0x18] sm:$0xff]
        %v308 = vld [vmem:[#allocation5 + $0x20] sm:$0xff]
        %v309 = vld [vmem:[#allocation5 + $0x28] sm:$0xff]
        %v310 = vld [vmem:[#allocation5 + $0x30] sm:$0xff]
        %v311 = vld [vmem:[#allocation5 + $0x38] sm:$0xff]
        %v312 = vld [vmem:[#allocation5 + $0x40] sm:$0xff]
        %v313 = vld [vmem:[#allocation5 + $0x48] sm:$0xff]
        %v314 = vld [vmem:[#allocation5 + $0x50] sm:$0xff]
        %v315 = vld [vmem:[#allocation5 + $0x58] sm:$0xff]
        %v316 = vld [vmem:[#allocation5 + $0x60] sm:$0xff]
        %v317 = vld [vmem:[#allocation5 + $0x68] sm:$0xff]
        %v318 = vld [vmem:[#allocation5 + $0x70] sm:$0xff]
        %v319 = vld [vmem:[#allocation5 + $0x78] sm:$0xff]
        %v320 = vld [vmem:[#allocation5 + $0x80] sm:$0xff]
        %v321 = vld [vmem:[#allocation5 + $0x88] sm:$0xff]
        %v322 = vld [vmem:[#allocation5 + $0x90] sm:$0xff]
        %v323 = vld [vmem:[#allocation5 + $0x98] sm:$0xff]
        %v324 = vld [vmem:[#allocation5 + $0xa0] sm:$0xff]
        %v325 = vld [vmem:[#allocation5 + $0xa8] sm:$0xff]
        %v326 = vld [vmem:[#allocation5 + $0xb0] sm:$0xff]
        %v327 = vld [vmem:[#allocation5 + $0xb8] sm:$0xff]
        %v328 = vld [vmem:[#allocation5 + $0xc0] sm:$0xff]
        %v329 = vld [vmem:[#allocation5 + $0xc8] sm:$0xff]
        %v330 = vld [vmem:[#allocation5 + $0xd0] sm:$0xff]
        %v331 = vld [vmem:[#allocation5 + $0xd8] sm:$0xff]
        %v332 = vld [vmem:[#allocation5 + $0xe0] sm:$0xff]
        %v333 = vld [vmem:[#allocation5 + $0xe8] sm:$0xff]
        %v334 = vld [vmem:[#allocation5 + $0xf0] sm:$0xff]
        %v335 = vld [vmem:[#allocation5 + $0xf8] sm:$0xff]
        %v336 = vld [vmem:[#allocation5 + $0x100] sm:$0xff]
        %v337 = vld [vmem:[#allocation5 + $0x108] sm:$0xff]
        %v338 = vld [vmem:[#allocation5 + $0x110] sm:$0xff]
        %v339 = vld [vmem:[#allocation5 + $0x118] sm:$0xff]
        %v340 = vld [vmem:[#allocation5 + $0x120] sm:$0xff]
        %v341 = vld [vmem:[#allocation5 + $0x128] sm:$0xff]
        %v342 = vld [vmem:[#allocation5 + $0x130] sm:$0xff]
        %v343 = vld [vmem:[#allocation5 + $0x138] sm:$0xff]
        %v344 = vld [vmem:[#allocation5 + $0x140] sm:$0xff]
        %v345 = vld [vmem:[#allocation5 + $0x148] sm:$0xff]
        %v346 = vld [vmem:[#allocation5 + $0x150] sm:$0xff]
        %v347 = vld [vmem:[#allocation5 + $0x158] sm:$0xff]
        %v348 = vld [vmem:[#allocation5 + $0x160] sm:$0xff]
        %v349 = vld [vmem:[#allocation5 + $0x168] sm:$0xff]
        %v350 = vld [vmem:[#allocation5 + $0x170] sm:$0xff]
        %v351 = vld [vmem:[#allocation5 + $0x178] sm:$0xff]
        %v352 = vld [vmem:[#allocation5 + $0x180] sm:$0xff]
        %v353 = vld [vmem:[#allocation5 + $0x188] sm:$0xff]
        %v354 = vld [vmem:[#allocation5 + $0x190] sm:$0xff]
        %v355 = vld [vmem:[#allocation5 + $0x198] sm:$0xff]
        %v356 = vld [vmem:[#allocation5 + $0x1a0] sm:$0xff]
        %v357 = vld [vmem:[#allocation5 + $0x1a8] sm:$0xff]
        %v358 = vld [vmem:[#allocation5 + $0x1b0] sm:$0xff]
        %v359 = vld [vmem:[#allocation5 + $0x1b8] sm:$0xff]
        %v360 = vld [vmem:[#allocation5 + $0x1c0] sm:$0xff]
        %v361 = vld [vmem:[#allocation5 + $0x1c8] sm:$0xff]
        %v362 = vld [vmem:[#allocation5 + $0x1d0] sm:$0xff]
        %v363 = vld [vmem:[#allocation5 + $0x1d8] sm:$0xff]
        %v364 = vld [vmem:[#allocation5 + $0x1e0] sm:$0xff]
        %v365 = vld [vmem:[#allocation5 + $0x1e8] sm:$0xff]
        %v366 = vld [vmem:[#allocation5 + $0x1f0] sm:$0xff]
        %v367 = vld [vmem:[#allocation5 + $0x1f8] sm:$0xff]
        %v368 = vld [vmem:[#allocation7] ss:$4 sm:$0xf]
        %v370 = vlaneseq
        %v371 = vshrl.u32 %v370, 7
        %v372 = vsub.s32 0, %v371
        %v373 = vrot.slane %v368, %v372
        %v374 = vlaneseq
        %v375 = vshrl.u32 %v374, 7
        %v376 = vsub.s32 1, %v375
        %v377 = vrot.slane %v368, %v376
        %v378 = vlaneseq
        %v379 = vshrl.u32 %v378, 7
        %v380 = vsub.s32 2, %v379
        %v381 = vrot.slane %v368, %v380
        %v382 = vlaneseq
        %v383 = vshrl.u32 %v382, 7
        %v384 = vsub.s32 3, %v383
        %v385 = vrot.slane %v368, %v384
        %v406 = vunpack.c.l.b16 %v288
        %v407 = vunpack.c.h.b16 %v288
        %v408 = vunpack.c.l.b16 %v289
        %v409 = vunpack.c.h.b16 %v289
        %v410 = vunpack.c.l.b16 %v290
        %v411 = vunpack.c.h.b16 %v290
        %v412 = vunpack.c.l.b16 %v291
        %v413 = vunpack.c.h.b16 %v291
        %v414 = vunpack.c.l.b16 %v292
        %v415 = vunpack.c.h.b16 %v292
        %v416 = vunpack.c.l.b16 %v293
        %v417 = vunpack.c.h.b16 %v293
        %v418 = vunpack.c.l.b16 %v294
        %v419 = vunpack.c.h.b16 %v294
        %v420 = vunpack.c.l.b16 %v295
        %v421 = vunpack.c.h.b16 %v295
        %v422 = vunpack.c.l.b16 %v296
        %v423 = vunpack.c.h.b16 %v296
        %v424 = vunpack.c.l.b16 %v297
        %v425 = vunpack.c.h.b16 %v297
        %v426 = vunpack.c.l.b16 %v298
        %v427 = vunpack.c.h.b16 %v298
        %v428 = vunpack.c.l.b16 %v299
        %v429 = vunpack.c.h.b16 %v299
        %v430 = vunpack.c.l.b16 %v300
        %v431 = vunpack.c.h.b16 %v300
        %v432 = vunpack.c.l.b16 %v301
        %v433 = vunpack.c.h.b16 %v301
        %v434 = vunpack.c.l.b16 %v302
        %v435 = vunpack.c.h.b16 %v302
        %v436 = vunpack.c.l.b16 %v303
        %v437 = vunpack.c.h.b16 %v303
        %v438 = vpack.c.b16 %v408, %v406
        %v439 = vpack.c.b16 %v409, %v407
        %v440 = vpack.c.b16 %v412, %v410
        %v441 = vpack.c.b16 %v413, %v411
        %v442 = vpack.c.b16 %v416, %v414
        %v443 = vpack.c.b16 %v417, %v415
        %v444 = vpack.c.b16 %v420, %v418
        %v445 = vpack.c.b16 %v421, %v419
        %v446 = vpack.c.b16 %v424, %v422
        %v447 = vpack.c.b16 %v425, %v423
        %v448 = vpack.c.b16 %v428, %v426
        %v449 = vpack.c.b16 %v429, %v427
        %v450 = vpack.c.b16 %v432, %v430
        %v451 = vpack.c.b16 %v433, %v431
        %v452 = vpack.c.b16 %v436, %v434
        %v453 = vpack.c.b16 %v437, %v435
        %v534 = vunpack.c.l.b16 %v304
        %v535 = vunpack.c.h.b16 %v304
        %v536 = vunpack.c.l.b16 %v305
        %v537 = vunpack.c.h.b16 %v305
        %v538 = vunpack.c.l.b16 %v306
        %v539 = vunpack.c.h.b16 %v306
        %v540 = vunpack.c.l.b16 %v307
        %v541 = vunpack.c.h.b16 %v307
        %v542 = vunpack.c.l.b16 %v308
        %v543 = vunpack.c.h.b16 %v308
        %v544 = vunpack.c.l.b16 %v309
        %v545 = vunpack.c.h.b16 %v309
        %v546 = vunpack.c.l.b16 %v310
        %v547 = vunpack.c.h.b16 %v310
        %v548 = vunpack.c.l.b16 %v311
        %v549 = vunpack.c.h.b16 %v311
        %v550 = vunpack.c.l.b16 %v312
        %v551 = vunpack.c.h.b16 %v312
        %v552 = vunpack.c.l.b16 %v313
        %v553 = vunpack.c.h.b16 %v313
        %v554 = vunpack.c.l.b16 %v314
        %v555 = vunpack.c.h.b16 %v314
        %v556 = vunpack.c.l.b16 %v315
        %v557 = vunpack.c.h.b16 %v315
        %v558 = vunpack.c.l.b16 %v316
        %v559 = vunpack.c.h.b16 %v316
        %v560 = vunpack.c.l.b16 %v317
        %v561 = vunpack.c.h.b16 %v317
        %v562 = vunpack.c.l.b16 %v318
        %v563 = vunpack.c.h.b16 %v318
        %v564 = vunpack.c.l.b16 %v319
        %v565 = vunpack.c.h.b16 %v319
        %v566 = vunpack.c.l.b16 %v320
        %v567 = vunpack.c.h.b16 %v320
        %v568 = vunpack.c.l.b16 %v321
        %v569 = vunpack.c.h.b16 %v321
        %v570 = vunpack.c.l.b16 %v322
        %v571 = vunpack.c.h.b16 %v322
        %v572 = vunpack.c.l.b16 %v323
        %v573 = vunpack.c.h.b16 %v323
        %v574 = vunpack.c.l.b16 %v324
        %v575 = vunpack.c.h.b16 %v324
        %v576 = vunpack.c.l.b16 %v325
        %v577 = vunpack.c.h.b16 %v325
        %v578 = vunpack.c.l.b16 %v326
        %v579 = vunpack.c.h.b16 %v326
        %v580 = vunpack.c.l.b16 %v327
        %v581 = vunpack.c.h.b16 %v327
        %v582 = vunpack.c.l.b16 %v328
        %v583 = vunpack.c.h.b16 %v328
        %v584 = vunpack.c.l.b16 %v329
        %v585 = vunpack.c.h.b16 %v329
        %v586 = vunpack.c.l.b16 %v330
        %v587 = vunpack.c.h.b16 %v330
        %v588 = vunpack.c.l.b16 %v331
        %v589 = vunpack.c.h.b16 %v331
        %v590 = vunpack.c.l.b16 %v332
        %v591 = vunpack.c.h.b16 %v332
        %v592 = vunpack.c.l.b16 %v333
        %v593 = vunpack.c.h.b16 %v333
        %v594 = vunpack.c.l.b16 %v334
        %v595 = vunpack.c.h.b16 %v334
        %v596 = vunpack.c.l.b16 %v335
        %v597 = vunpack.c.h.b16 %v335
        %v598 = vunpack.c.l.b16 %v336
        %v599 = vunpack.c.h.b16 %v336
        %v600 = vunpack.c.l.b16 %v337
        %v601 = vunpack.c.h.b16 %v337
        %v602 = vunpack.c.l.b16 %v338
        %v603 = vunpack.c.h.b16 %v338
        %v604 = vunpack.c.l.b16 %v339
        %v605 = vunpack.c.h.b16 %v339
        %v606 = vunpack.c.l.b16 %v340
        %v607 = vunpack.c.h.b16 %v340
        %v608 = vunpack.c.l.b16 %v341
        %v609 = vunpack.c.h.b16 %v341
        %v610 = vunpack.c.l.b16 %v342
        %v611 = vunpack.c.h.b16 %v342
        %v612 = vunpack.c.l.b16 %v343
        %v613 = vunpack.c.h.b16 %v343
        %v614 = vunpack.c.l.b16 %v344
        %v615 = vunpack.c.h.b16 %v344
        %v616 = vunpack.c.l.b16 %v345
        %v617 = vunpack.c.h.b16 %v345
        %v618 = vunpack.c.l.b16 %v346
        %v619 = vunpack.c.h.b16 %v346
        %v620 = vunpack.c.l.b16 %v347
        %v621 = vunpack.c.h.b16 %v347
        %v622 = vunpack.c.l.b16 %v348
        %v623 = vunpack.c.h.b16 %v348
        %v624 = vunpack.c.l.b16 %v349
        %v625 = vunpack.c.h.b16 %v349
        %v626 = vunpack.c.l.b16 %v350
        %v627 = vunpack.c.h.b16 %v350
        %v628 = vunpack.c.l.b16 %v351
        %v629 = vunpack.c.h.b16 %v351
        %v630 = vunpack.c.l.b16 %v352
        %v631 = vunpack.c.h.b16 %v352
        %v632 = vunpack.c.l.b16 %v353
        %v633 = vunpack.c.h.b16 %v353
        %v634 = vunpack.c.l.b16 %v354
        %v635 = vunpack.c.h.b16 %v354
        %v636 = vunpack.c.l.b16 %v355
        %v637 = vunpack.c.h.b16 %v355
        %v638 = vunpack.c.l.b16 %v356
        %v639 = vunpack.c.h.b16 %v356
        %v640 = vunpack.c.l.b16 %v357
        %v641 = vunpack.c.h.b16 %v357
        %v642 = vunpack.c.l.b16 %v358
        %v643 = vunpack.c.h.b16 %v358
        %v644 = vunpack.c.l.b16 %v359
        %v645 = vunpack.c.h.b16 %v359
        %v646 = vunpack.c.l.b16 %v360
        %v647 = vunpack.c.h.b16 %v360
        %v648 = vunpack.c.l.b16 %v361
        %v649 = vunpack.c.h.b16 %v361
        %v650 = vunpack.c.l.b16 %v362
        %v651 = vunpack.c.h.b16 %v362
        %v652 = vunpack.c.l.b16 %v363
        %v653 = vunpack.c.h.b16 %v363
        %v654 = vunpack.c.l.b16 %v364
        %v655 = vunpack.c.h.b16 %v364
        %v656 = vunpack.c.l.b16 %v365
        %v657 = vunpack.c.h.b16 %v365
        %v658 = vunpack.c.l.b16 %v366
        %v659 = vunpack.c.h.b16 %v366
        %v660 = vunpack.c.l.b16 %v367
        %v661 = vunpack.c.h.b16 %v367
        %v662 = vpack.c.b16 %v538, %v534
        %v663 = vpack.c.b16 %v539, %v535
        %v664 = vpack.c.b16 %v540, %v536
        %v665 = vpack.c.b16 %v541, %v537
        %v666 = vpack.c.b16 %v546, %v542
        %v667 = vpack.c.b16 %v547, %v543
        %v668 = vpack.c.b16 %v548, %v544
        %v669 = vpack.c.b16 %v549, %v545
        %v670 = vpack.c.b16 %v554, %v550
        %v671 = vpack.c.b16 %v555, %v551
        %v672 = vpack.c.b16 %v556, %v552
        %v673 = vpack.c.b16 %v557, %v553
        %v674 = vpack.c.b16 %v562, %v558
        %v675 = vpack.c.b16 %v563, %v559
        %v676 = vpack.c.b16 %v564, %v560
        %v677 = vpack.c.b16 %v565, %v561
        %v678 = vpack.c.b16 %v570, %v566
        %v679 = vpack.c.b16 %v571, %v567
        %v680 = vpack.c.b16 %v572, %v568
        %v681 = vpack.c.b16 %v573, %v569
        %v682 = vpack.c.b16 %v578, %v574
        %v683 = vpack.c.b16 %v579, %v575
        %v684 = vpack.c.b16 %v580, %v576
        %v685 = vpack.c.b16 %v581, %v577
        %v686 = vpack.c.b16 %v586, %v582
        %v687 = vpack.c.b16 %v587, %v583
        %v688 = vpack.c.b16 %v588, %v584
        %v689 = vpack.c.b16 %v589, %v585
        %v690 = vpack.c.b16 %v594, %v590
        %v691 = vpack.c.b16 %v595, %v591
        %v692 = vpack.c.b16 %v596, %v592
        %v693 = vpack.c.b16 %v597, %v593
        %v694 = vpack.c.b16 %v602, %v598
        %v695 = vpack.c.b16 %v603, %v599
        %v696 = vpack.c.b16 %v604, %v600
        %v697 = vpack.c.b16 %v605, %v601
        %v698 = vpack.c.b16 %v610, %v606
        %v699 = vpack.c.b16 %v611, %v607
        %v700 = vpack.c.b16 %v612, %v608
        %v701 = vpack.c.b16 %v613, %v609
        %v702 = vpack.c.b16 %v618, %v614
        %v703 = vpack.c.b16 %v619, %v615
        %v704 = vpack.c.b16 %v620, %v616
        %v705 = vpack.c.b16 %v621, %v617
        %v706 = vpack.c.b16 %v626, %v622
        %v707 = vpack.c.b16 %v627, %v623
        %v708 = vpack.c.b16 %v628, %v624
        %v709 = vpack.c.b16 %v629, %v625
        %v710 = vpack.c.b16 %v634, %v630
        %v711 = vpack.c.b16 %v635, %v631
        %v712 = vpack.c.b16 %v636, %v632
        %v713 = vpack.c.b16 %v637, %v633
        %v714 = vpack.c.b16 %v642, %v638
        %v715 = vpack.c.b16 %v643, %v639
        %v716 = vpack.c.b16 %v644, %v640
        %v717 = vpack.c.b16 %v645, %v641
        %v718 = vpack.c.b16 %v650, %v646
        %v719 = vpack.c.b16 %v651, %v647
        %v720 = vpack.c.b16 %v652, %v648
        %v721 = vpack.c.b16 %v653, %v649
        %v722 = vpack.c.b16 %v658, %v654
        %v723 = vpack.c.b16 %v659, %v655
        %v724 = vpack.c.b16 %v660, %v656
        %v725 = vpack.c.b16 %v661, %v657
        %790 = vmatprep.subr.bf16.mxu0 %v663
        %791 = vmatpush1.bf16.msra.mxu0 %v662
        %792 = vmatprep.subr.bf16.mxu0 %v667
        %793 = vmatpush1.bf16.msra.mxu0 %v666
        %794 = vmatprep.subr.bf16.mxu0 %v671
        %795 = vmatpush1.bf16.msra.mxu0 %v670
        %796 = vmatprep.subr.bf16.mxu0 %v675
        %797 = vmatpush1.bf16.msra.mxu0 %v674
        %798 = vmatprep.subr.bf16.mxu0 %v679
        %799 = vmatpush1.bf16.msra.mxu0 %v678
        %800 = vmatprep.subr.bf16.mxu0 %v683
        %801 = vmatpush1.bf16.msra.mxu0 %v682
        %802 = vmatprep.subr.bf16.mxu0 %v687
        %803 = vmatpush1.bf16.msra.mxu0 %v686
        %804 = vmatprep.subr.bf16.mxu0 %v691
        %805 = vmatpush1.bf16.msra.mxu0 %v690
        %806 = vmatprep.subr.bf16.mxu0 %v695
        %807 = vmatpush1.bf16.msra.mxu0 %v694
        %808 = vmatprep.subr.bf16.mxu0 %v699
        %809 = vmatpush1.bf16.msra.mxu0 %v698
        %810 = vmatprep.subr.bf16.mxu0 %v703
        %811 = vmatpush1.bf16.msra.mxu0 %v702
        %812 = vmatprep.subr.bf16.mxu0 %v707
        %813 = vmatpush1.bf16.msra.mxu0 %v706
        %814 = vmatprep.subr.bf16.mxu0 %v711
        %815 = vmatpush1.bf16.msra.mxu0 %v710
        %816 = vmatprep.subr.bf16.mxu0 %v715
        %817 = vmatpush1.bf16.msra.mxu0 %v714
        %818 = vmatprep.subr.bf16.mxu0 %v719
        %819 = vmatpush1.bf16.msra.mxu0 %v718
        %820 = vmatprep.subr.bf16.mxu0 %v723
        %821 = vmatpush1.bf16.msra.mxu0 %v722
        %822 = vmatprep.mubr.bf16.mxu0 %v439
        %823 = vmatmul.mubr.bf16.gmra.mrb[0].mxu0 %v438
        %v824 = vpop.f32.mrb[0].mxu0
        %v825 = vadd.f32 %v373, %v824
        %v826 = vpop.f32.mrb[0].mxu0
        %v827 = vadd.f32 %v377, %v826
        %v828 = vpop.f32.mrb[0].mxu0
        %v829 = vadd.f32 %v373, %v828
        %v830 = vpop.f32.mrb[0].mxu0
        %v831 = vadd.f32 %v377, %v830
        %832 = vmatprep.mubr.bf16.mxu0 %v441
        %833 = vmatmul.mubr.bf16.gmra.mrb[0].mxu0 %v440
        %v834 = vpop.f32.mrb[0].mxu0
        %v835 = vadd.f32 %v373, %v834
        %v836 = vpop.f32.mrb[0].mxu0
        %v837 = vadd.f32 %v377, %v836
        %v838 = vpop.f32.mrb[0].mxu0
        %v839 = vadd.f32 %v373, %v838
        %v840 = vpop.f32.mrb[0].mxu0
        %v841 = vadd.f32 %v377, %v840
        %842 = vmatprep.mubr.bf16.mxu0 %v443
        %843 = vmatmul.mubr.bf16.gmra.mrb[0].mxu0 %v442
        %v844 = vpop.f32.mrb[0].mxu0
        %v845 = vadd.f32 %v373, %v844
        %v846 = vpop.f32.mrb[0].mxu0
        %v847 = vadd.f32 %v377, %v846
        %v848 = vpop.f32.mrb[0].mxu0
        %v849 = vadd.f32 %v373, %v848
        %v850 = vpop.f32.mrb[0].mxu0
        %v851 = vadd.f32 %v377, %v850
        %852 = vmatprep.mubr.bf16.mxu0 %v445
        %853 = vmatmul.mubr.bf16.gmra.mrb[0].mxu0 %v444
        %v854 = vpop.f32.mrb[0].mxu0
        %v855 = vadd.f32 %v373, %v854
        %v856 = vpop.f32.mrb[0].mxu0
        %v857 = vadd.f32 %v377, %v856
        %v858 = vpop.f32.mrb[0].mxu0
        %v859 = vadd.f32 %v373, %v858
        %v860 = vpop.f32.mrb[0].mxu0
        %v861 = vadd.f32 %v377, %v860
        %862 = vmatprep.mubr.bf16.mxu0 %v447
        %863 = vmatmul.mubr.bf16.gmra.mrb[0].mxu0 %v446
        %v864 = vpop.f32.mrb[0].mxu0
        %v865 = vadd.f32 %v373, %v864
        %v866 = vpop.f32.mrb[0].mxu0
        %v867 = vadd.f32 %v377, %v866
        %v868 = vpop.f32.mrb[0].mxu0
        %v869 = vadd.f32 %v373, %v868
        %v870 = vpop.f32.mrb[0].mxu0
        %v871 = vadd.f32 %v377, %v870
        %872 = vmatprep.mubr.bf16.mxu0 %v449
        %873 = vmatmul.mubr.bf16.gmra.mrb[0].mxu0 %v448
        %v874 = vpop.f32.mrb[0].mxu0
        %v875 = vadd.f32 %v373, %v874
        %v876 = vpop.f32.mrb[0].mxu0
        %v877 = vadd.f32 %v377, %v876
        %v878 = vpop.f32.mrb[0].mxu0
        %v879 = vadd.f32 %v373, %v878
        %v880 = vpop.f32.mrb[0].mxu0
        %v881 = vadd.f32 %v377, %v880
        %882 = vmatprep.mubr.bf16.mxu0 %v451
        %883 = vmatmul.mubr.bf16.gmra.mrb[0].mxu0 %v450
        %v884 = vpop.f32.mrb[0].mxu0
        %v885 = vadd.f32 %v373, %v884
        %v886 = vpop.f32.mrb[0].mxu0
        %v887 = vadd.f32 %v377, %v886
        %v888 = vpop.f32.mrb[0].mxu0
        %v889 = vadd.f32 %v373, %v888
        %v890 = vpop.f32.mrb[0].mxu0
        %v891 = vadd.f32 %v377, %v890
        %892 = vmatprep.mubr.bf16.mxu0 %v453
        %893 = vmatmul.mubr.bf16.gmra.mrb[0].mxu0 %v452
        %v894 = vpop.f32.mrb[0].mxu0
        %v895 = vadd.f32 %v373, %v894
        %v896 = vpop.f32.mrb[0].mxu0
        %v897 = vadd.f32 %v377, %v896
        %v898 = vpop.f32.mrb[0].mxu0
        %v899 = vadd.f32 %v373, %v898
        %v900 = vpop.f32.mrb[0].mxu0
        %v901 = vadd.f32 %v377, %v900
        %902 = vdwg.mxu0
        %903 = vmatprep.subr.bf16.mxu0 %v665
        %904 = vmatpush1.bf16.msra.mxu0 %v664
        %905 = vmatprep.subr.bf16.mxu0 %v669
        %906 = vmatpush1.bf16.msra.mxu0 %v668
        %907 = vmatprep.subr.bf16.mxu0 %v673
        %908 = vmatpush1.bf16.msra.mxu0 %v672
        %909 = vmatprep.subr.bf16.mxu0 %v677
        %910 = vmatpush1.bf16.msra.mxu0 %v676
        %911 = vmatprep.subr.bf16.mxu0 %v681
        %912 = vmatpush1.bf16.msra.mxu0 %v680
        %913 = vmatprep.subr.bf16.mxu0 %v685
        %914 = vmatpush1.bf16.msra.mxu0 %v684
        %915 = vmatprep.subr.bf16.mxu0 %v689
        %916 = vmatpush1.bf16.msra.mxu0 %v688
        %917 = vmatprep.subr.bf16.mxu0 %v693
        %918 = vmatpush1.bf16.msra.mxu0 %v692
        %919 = vmatprep.subr.bf16.mxu0 %v697
        %920 = vmatpush1.bf16.msra.mxu0 %v696
        %921 = vmatprep.subr.bf16.mxu0 %v701
        %922 = vmatpush1.bf16.msra.mxu0 %v700
        %923 = vmatprep.subr.bf16.mxu0 %v705
        %924 = vmatpush1.bf16.msra.mxu0 %v704
        %925 = vmatprep.subr.bf16.mxu0 %v709
        %926 = vmatpush1.bf16.msra.mxu0 %v708
        %927 = vmatprep.subr.bf16.mxu0 %v713
        %928 = vmatpush1.bf16.msra.mxu0 %v712
        %929 = vmatprep.subr.bf16.mxu0 %v717
        %930 = vmatpush1.bf16.msra.mxu0 %v716
        %931 = vmatprep.subr.bf16.mxu0 %v721
        %932 = vmatpush1.bf16.msra.mxu0 %v720
        %933 = vmatprep.subr.bf16.mxu0 %v725
        %934 = vmatpush1.bf16.msra.mxu0 %v724
        %935 = vmatprep.mubr.bf16.mxu0 %v439
        %936 = vmatmul.mubr.bf16.gmra.mrb[0].mxu0 %v438
        %v937 = vpop.f32.mrb[0].mxu0
        %v938 = vadd.f32 %v381, %v937
        %v939 = vpop.f32.mrb[0].mxu0
        %v940 = vadd.f32 %v385, %v939
        %v941 = vpop.f32.mrb[0].mxu0
        %v942 = vadd.f32 %v381, %v941
        %v943 = vpop.f32.mrb[0].mxu0
        %v944 = vadd.f32 %v385, %v943
        %945 = vmatprep.mubr.bf16.mxu0 %v441
        %946 = vmatmul.mubr.bf16.gmra.mrb[0].mxu0 %v440
        %v947 = vpop.f32.mrb[0].mxu0
        %v948 = vadd.f32 %v381, %v947
        %v949 = vpop.f32.mrb[0].mxu0
        %v950 = vadd.f32 %v385, %v949
        %v951 = vpop.f32.mrb[0].mxu0
        %v952 = vadd.f32 %v381, %v951
        %v953 = vpop.f32.mrb[0].mxu0
        %v954 = vadd.f32 %v385, %v953
        %955 = vmatprep.mubr.bf16.mxu0 %v443
        %956 = vmatmul.mubr.bf16.gmra.mrb[0].mxu0 %v442
        %v957 = vpop.f32.mrb[0].mxu0
        %v958 = vadd.f32 %v381, %v957
        %v959 = vpop.f32.mrb[0].mxu0
        %v960 = vadd.f32 %v385, %v959
        %v961 = vpop.f32.mrb[0].mxu0
        %v962 = vadd.f32 %v381, %v961
        %v963 = vpop.f32.mrb[0].mxu0
        %v964 = vadd.f32 %v385, %v963
        %965 = vmatprep.mubr.bf16.mxu0 %v445
        %966 = vmatmul.mubr.bf16.gmra.mrb[0].mxu0 %v444
        %v967 = vpop.f32.mrb[0].mxu0
        %v968 = vadd.f32 %v381, %v967
        %v969 = vpop.f32.mrb[0].mxu0
        %v970 = vadd.f32 %v385, %v969
        %v971 = vpop.f32.mrb[0].mxu0
        %v972 = vadd.f32 %v381, %v971
        %v973 = vpop.f32.mrb[0].mxu0
        %v974 = vadd.f32 %v385, %v973
        %975 = vmatprep.mubr.bf16.mxu0 %v447
        %976 = vmatmul.mubr.bf16.gmra.mrb[0].mxu0 %v446
        %v977 = vpop.f32.mrb[0].mxu0
        %v978 = vadd.f32 %v381, %v977
        %v979 = vpop.f32.mrb[0].mxu0
        %v980 = vadd.f32 %v385, %v979
        %v981 = vpop.f32.mrb[0].mxu0
        %v982 = vadd.f32 %v381, %v981
        %v983 = vpop.f32.mrb[0].mxu0
        %v984 = vadd.f32 %v385, %v983
        %985 = vmatprep.mubr.bf16.mxu0 %v449
        %986 = vmatmul.mubr.bf16.gmra.mrb[0].mxu0 %v448
        %v987 = vpop.f32.mrb[0].mxu0
        %v988 = vadd.f32 %v381, %v987
        %v989 = vpop.f32.mrb[0].mxu0
        %v990 = vadd.f32 %v385, %v989
        %v991 = vpop.f32.mrb[0].mxu0
        %v992 = vadd.f32 %v381, %v991
        %v993 = vpop.f32.mrb[0].mxu0
        %v994 = vadd.f32 %v385, %v993
        %995 = vmatprep.mubr.bf16.mxu0 %v451
        %996 = vmatmul.mubr.bf16.gmra.mrb[0].mxu0 %v450
        %v997 = vpop.f32.mrb[0].mxu0
        %v998 = vadd.f32 %v381, %v997
        %v999 = vpop.f32.mrb[0].mxu0
        %v1000 = vadd.f32 %v385, %v999
        %v1001 = vpop.f32.mrb[0].mxu0
        %v1002 = vadd.f32 %v381, %v1001
        %v1003 = vpop.f32.mrb[0].mxu0
        %v1004 = vadd.f32 %v385, %v1003
        %1005 = vmatprep.mubr.bf16.mxu0 %v453
        %1006 = vmatmul.mubr.bf16.gmra.mrb[0].mxu0 %v452
        %v1007 = vpop.f32.mrb[0].mxu0
        %v1008 = vadd.f32 %v381, %v1007
        %v1009 = vpop.f32.mrb[0].mxu0
        %v1010 = vadd.f32 %v385, %v1009
        %v1011 = vpop.f32.mrb[0].mxu0
        %v1012 = vadd.f32 %v381, %v1011
        %v1013 = vpop.f32.mrb[0].mxu0
        %v1014 = vadd.f32 %v385, %v1013
        %1015 = vdwg.mxu0
        %v1016 = vadd.f32 %v825, %v827
        %v1017 = vadd.f32 %v1016, %v938
        %v1018 = vadd.f32 %v1017, %v940
        %1019 = vadd.xlane.f32.xlu0 %v1018
        %v1020 = vpop.xlane.xlu0 %1019
        %v1021 = vadd.f32 %v829, %v831
        %v1022 = vadd.f32 %v1021, %v942
        %v1023 = vadd.f32 %v1022, %v944
        %1024 = vadd.xlane.f32.xlu0 %v1023
        %v1025 = vpop.xlane.xlu0 %1024
        %v1026 = vadd.f32 %v835, %v837
        %v1027 = vadd.f32 %v1026, %v948
        %v1028 = vadd.f32 %v1027, %v950
        %1029 = vadd.xlane.f32.xlu0 %v1028
        %v1030 = vpop.xlane.xlu0 %1029
        %v1031 = vadd.f32 %v839, %v841
        %v1032 = vadd.f32 %v1031, %v952
        %v1033 = vadd.f32 %v1032, %v954
        %1034 = vadd.xlane.f32.xlu0 %v1033
        %v1035 = vpop.xlane.xlu0 %1034
        %v1036 = vadd.f32 %v845, %v847
        %v1037 = vadd.f32 %v1036, %v958
        %v1038 = vadd.f32 %v1037, %v960
        %1039 = vadd.xlane.f32.xlu0 %v1038
        %v1040 = vpop.xlane.xlu0 %1039
        %v1041 = vadd.f32 %v849, %v851
        %v1042 = vadd.f32 %v1041, %v962
        %v1043 = vadd.f32 %v1042, %v964
        %1044 = vadd.xlane.f32.xlu0 %v1043
        %v1045 = vpop.xlane.xlu0 %1044
        %v1046 = vadd.f32 %v855, %v857
        %v1047 = vadd.f32 %v1046, %v968
        %v1048 = vadd.f32 %v1047, %v970
        %1049 = vadd.xlane.f32.xlu0 %v1048
        %v1050 = vpop.xlane.xlu0 %1049
        %v1051 = vadd.f32 %v859, %v861
        %v1052 = vadd.f32 %v1051, %v972
        %v1053 = vadd.f32 %v1052, %v974
        %1054 = vadd.xlane.f32.xlu0 %v1053
        %v1055 = vpop.xlane.xlu0 %1054
        %v1056 = vadd.f32 %v865, %v867
        %v1057 = vadd.f32 %v1056, %v978
        %v1058 = vadd.f32 %v1057, %v980
        %1059 = vadd.xlane.f32.xlu0 %v1058
        %v1060 = vpop.xlane.xlu0 %1059
        %v1061 = vadd.f32 %v869, %v871
        %v1062 = vadd.f32 %v1061, %v982
        %v1063 = vadd.f32 %v1062, %v984
        %1064 = vadd.xlane.f32.xlu0 %v1063
        %v1065 = vpop.xlane.xlu0 %1064
        %v1066 = vadd.f32 %v875, %v877
        %v1067 = vadd.f32 %v1066, %v988
        %v1068 = vadd.f32 %v1067, %v990
        %1069 = vadd.xlane.f32.xlu0 %v1068
        %v1070 = vpop.xlane.xlu0 %1069
        %v1071 = vadd.f32 %v879, %v881
        %v1072 = vadd.f32 %v1071, %v992
        %v1073 = vadd.f32 %v1072, %v994
        %1074 = vadd.xlane.f32.xlu0 %v1073
        %v1075 = vpop.xlane.xlu0 %1074
        %v1076 = vadd.f32 %v885, %v887
        %v1077 = vadd.f32 %v1076, %v998
        %v1078 = vadd.f32 %v1077, %v1000
        %1079 = vadd.xlane.f32.xlu0 %v1078
        %v1080 = vpop.xlane.xlu0 %1079
        %v1081 = vadd.f32 %v889, %v891
        %v1082 = vadd.f32 %v1081, %v1002
        %v1083 = vadd.f32 %v1082, %v1004
        %1084 = vadd.xlane.f32.xlu0 %v1083
        %v1085 = vpop.xlane.xlu0 %1084
        %v1086 = vadd.f32 %v895, %v897
        %v1087 = vadd.f32 %v1086, %v1008
        %v1088 = vadd.f32 %v1087, %v1010
        %1089 = vadd.xlane.f32.xlu0 %v1088
        %v1090 = vpop.xlane.xlu0 %1089
        %v1091 = vadd.f32 %v899, %v901
        %v1092 = vadd.f32 %v1091, %v1012
        %v1093 = vadd.f32 %v1092, %v1014
        %1094 = vadd.xlane.f32.xlu0 %v1093
        %v1095 = vpop.xlane.xlu0 %1094
        %v1096 = vrcp.pop 512.0
        %v1097 = vmul.f32 %v1020, %v1096
        %v1098 = vmul.f32 %v1025, %v1096
        %v1099 = vmul.f32 %v1030, %v1096
        %v1100 = vmul.f32 %v1035, %v1096
        %v1101 = vmul.f32 %v1040, %v1096
        %v1102 = vmul.f32 %v1045, %v1096
        %v1103 = vmul.f32 %v1050, %v1096
        %v1104 = vmul.f32 %v1055, %v1096
        %v1105 = vmul.f32 %v1060, %v1096
        %v1106 = vmul.f32 %v1065, %v1096
        %v1107 = vmul.f32 %v1070, %v1096
        %v1108 = vmul.f32 %v1075, %v1096
        %v1109 = vmul.f32 %v1080, %v1096
        %v1110 = vmul.f32 %v1085, %v1096
        %v1111 = vmul.f32 %v1090, %v1096
        %v1112 = vmul.f32 %v1095, %v1096
        %v1113 = vsub.f32 %v825, %v1097
        %v1114 = vsub.f32 %v827, %v1097
        %v1115 = vsub.f32 %v938, %v1097
        %v1116 = vsub.f32 %v940, %v1097
        %v1117 = vsub.f32 %v829, %v1098
        %v1118 = vsub.f32 %v831, %v1098
        %v1119 = vsub.f32 %v942, %v1098
        %v1120 = vsub.f32 %v944, %v1098
        %v1121 = vsub.f32 %v835, %v1099
        %v1122 = vsub.f32 %v837, %v1099
        %v1123 = vsub.f32 %v948, %v1099
        %v1124 = vsub.f32 %v950, %v1099
        %v1125 = vsub.f32 %v839, %v1100
        %v1126 = vsub.f32 %v841, %v1100
        %v1127 = vsub.f32 %v952, %v1100
        %v1128 = vsub.f32 %v954, %v1100
        %v1129 = vsub.f32 %v845, %v1101
        %v1130 = vsub.f32 %v847, %v1101
        %v1131 = vsub.f32 %v958, %v1101
        %v1132 = vsub.f32 %v960, %v1101
        %v1133 = vsub.f32 %v849, %v1102
        %v1134 = vsub.f32 %v851, %v1102
        %v1135 = vsub.f32 %v962, %v1102
        %v1136 = vsub.f32 %v964, %v1102
        %v1137 = vsub.f32 %v855, %v1103
        %v1138 = vsub.f32 %v857, %v1103
        %v1139 = vsub.f32 %v968, %v1103
        %v1140 = vsub.f32 %v970, %v1103
        %v1141 = vsub.f32 %v859, %v1104
        %v1142 = vsub.f32 %v861, %v1104
        %v1143 = vsub.f32 %v972, %v1104
        %v1144 = vsub.f32 %v974, %v1104
        %v1145 = vsub.f32 %v865, %v1105
        %v1146 = vsub.f32 %v867, %v1105
        %v1147 = vsub.f32 %v978, %v1105
        %v1148 = vsub.f32 %v980, %v1105
        %v1149 = vsub.f32 %v869, %v1106
        %v1150 = vsub.f32 %v871, %v1106
        %v1151 = vsub.f32 %v982, %v1106
        %v1152 = vsub.f32 %v984, %v1106
        %v1153 = vsub.f32 %v875, %v1107
        %v1154 = vsub.f32 %v877, %v1107
        %v1155 = vsub.f32 %v988, %v1107
        %v1156 = vsub.f32 %v990, %v1107
        %v1157 = vsub.f32 %v879, %v1108
        %v1158 = vsub.f32 %v881, %v1108
        %v1159 = vsub.f32 %v992, %v1108
        %v1160 = vsub.f32 %v994, %v1108
        %v1161 = vsub.f32 %v885, %v1109
        %v1162 = vsub.f32 %v887, %v1109
        %v1163 = vsub.f32 %v998, %v1109
        %v1164 = vsub.f32 %v1000, %v1109
        %v1165 = vsub.f32 %v889, %v1110
        %v1166 = vsub.f32 %v891, %v1110
        %v1167 = vsub.f32 %v1002, %v1110
        %v1168 = vsub.f32 %v1004, %v1110
        %v1169 = vsub.f32 %v895, %v1111
        %v1170 = vsub.f32 %v897, %v1111
        %v1171 = vsub.f32 %v1008, %v1111
        %v1172 = vsub.f32 %v1010, %v1111
        %v1173 = vsub.f32 %v899, %v1112
        %v1174 = vsub.f32 %v901, %v1112
        %v1175 = vsub.f32 %v1012, %v1112
        %v1176 = vsub.f32 %v1014, %v1112
        %v1177 = vmul.f32 %v1113, %v1113
        %v1178 = vmul.f32 %v1114, %v1114
        %v1179 = vmul.f32 %v1115, %v1115
        %v1180 = vmul.f32 %v1116, %v1116
        %v1181 = vmul.f32 %v1117, %v1117
        %v1182 = vmul.f32 %v1118, %v1118
        %v1183 = vmul.f32 %v1119, %v1119
        %v1184 = vmul.f32 %v1120, %v1120
        %v1185 = vmul.f32 %v1121, %v1121
        %v1186 = vmul.f32 %v1122, %v1122
        %v1187 = vmul.f32 %v1123, %v1123
        %v1188 = vmul.f32 %v1124, %v1124
        %v1189 = vmul.f32 %v1125, %v1125
        %v1190 = vmul.f32 %v1126, %v1126
        %v1191 = vmul.f32 %v1127, %v1127
        %v1192 = vmul.f32 %v1128, %v1128
        %v1193 = vmul.f32 %v1129, %v1129
        %v1194 = vmul.f32 %v1130, %v1130
        %v1195 = vmul.f32 %v1131, %v1131
        %v1196 = vmul.f32 %v1132, %v1132
        %v1197 = vmul.f32 %v1133, %v1133
        %v1198 = vmul.f32 %v1134, %v1134
        %v1199 = vmul.f32 %v1135, %v1135
        %v1200 = vmul.f32 %v1136, %v1136
        %v1201 = vmul.f32 %v1137, %v1137
        %v1202 = vmul.f32 %v1138, %v1138
        %v1203 = vmul.f32 %v1139, %v1139
        %v1204 = vmul.f32 %v1140, %v1140
        %v1205 = vmul.f32 %v1141, %v1141
        %v1206 = vmul.f32 %v1142, %v1142
        %v1207 = vmul.f32 %v1143, %v1143
        %v1208 = vmul.f32 %v1144, %v1144
        %v1209 = vmul.f32 %v1145, %v1145
        %v1210 = vmul.f32 %v1146, %v1146
        %v1211 = vmul.f32 %v1147, %v1147
        %v1212 = vmul.f32 %v1148, %v1148
        %v1213 = vmul.f32 %v1149, %v1149
        %v1214 = vmul.f32 %v1150, %v1150
        %v1215 = vmul.f32 %v1151, %v1151
        %v1216 = vmul.f32 %v1152, %v1152
        %v1217 = vmul.f32 %v1153, %v1153
        %v1218 = vmul.f32 %v1154, %v1154
        %v1219 = vmul.f32 %v1155, %v1155
        %v1220 = vmul.f32 %v1156, %v1156
        %v1221 = vmul.f32 %v1157, %v1157
        %v1222 = vmul.f32 %v1158, %v1158
        %v1223 = vmul.f32 %v1159, %v1159
        %v1224 = vmul.f32 %v1160, %v1160
        %v1225 = vmul.f32 %v1161, %v1161
        %v1226 = vmul.f32 %v1162, %v1162
        %v1227 = vmul.f32 %v1163, %v1163
        %v1228 = vmul.f32 %v1164, %v1164
        %v1229 = vmul.f32 %v1165, %v1165
        %v1230 = vmul.f32 %v1166, %v1166
        %v1231 = vmul.f32 %v1167, %v1167
        %v1232 = vmul.f32 %v1168, %v1168
        %v1233 = vmul.f32 %v1169, %v1169
        %v1234 = vmul.f32 %v1170, %v1170
        %v1235 = vmul.f32 %v1171, %v1171
        %v1236 = vmul.f32 %v1172, %v1172
        %v1237 = vmul.f32 %v1173, %v1173
        %v1238 = vmul.f32 %v1174, %v1174
        %v1239 = vmul.f32 %v1175, %v1175
        %v1240 = vmul.f32 %v1176, %v1176
        %v1241 = vadd.f32 %v1177, %v1178
        %v1242 = vadd.f32 %v1241, %v1179
        %v1243 = vadd.f32 %v1242, %v1180
        %1244 = vadd.xlane.f32.xlu0 %v1243
        %v1245 = vpop.xlane.xlu0 %1244
        %v1246 = vadd.f32 %v1181, %v1182
        %v1247 = vadd.f32 %v1246, %v1183
        %v1248 = vadd.f32 %v1247, %v1184
        %1249 = vadd.xlane.f32.xlu0 %v1248
        %v1250 = vpop.xlane.xlu0 %1249
        %v1251 = vadd.f32 %v1185, %v1186
        %v1252 = vadd.f32 %v1251, %v1187
        %v1253 = vadd.f32 %v1252, %v1188
        %1254 = vadd.xlane.f32.xlu0 %v1253
        %v1255 = vpop.xlane.xlu0 %1254
        %v1256 = vadd.f32 %v1189, %v1190
        %v1257 = vadd.f32 %v1256, %v1191
        %v1258 = vadd.f32 %v1257, %v1192
        %1259 = vadd.xlane.f32.xlu0 %v1258
        %v1260 = vpop.xlane.xlu0 %1259
        %v1261 = vadd.f32 %v1193, %v1194
        %v1262 = vadd.f32 %v1261, %v1195
        %v1263 = vadd.f32 %v1262, %v1196
        %1264 = vadd.xlane.f32.xlu0 %v1263
        %v1265 = vpop.xlane.xlu0 %1264
        %v1266 = vadd.f32 %v1197, %v1198
        %v1267 = vadd.f32 %v1266, %v1199
        %v1268 = vadd.f32 %v1267, %v1200
        %1269 = vadd.xlane.f32.xlu0 %v1268
        %v1270 = vpop.xlane.xlu0 %1269
        %v1271 = vadd.f32 %v1201, %v1202
        %v1272 = vadd.f32 %v1271, %v1203
        %v1273 = vadd.f32 %v1272, %v1204
        %1274 = vadd.xlane.f32.xlu0 %v1273
        %v1275 = vpop.xlane.xlu0 %1274
        %v1276 = vadd.f32 %v1205, %v1206
        %v1277 = vadd.f32 %v1276, %v1207
        %v1278 = vadd.f32 %v1277, %v1208
        %1279 = vadd.xlane.f32.xlu0 %v1278
        %v1280 = vpop.xlane.xlu0 %1279
        %v1281 = vadd.f32 %v1209, %v1210
        %v1282 = vadd.f32 %v1281, %v1211
        %v1283 = vadd.f32 %v1282, %v1212
        %1284 = vadd.xlane.f32.xlu0 %v1283
        %v1285 = vpop.xlane.xlu0 %1284
        %v1286 = vadd.f32 %v1213, %v1214
        %v1287 = vadd.f32 %v1286, %v1215
        %v1288 = vadd.f32 %v1287, %v1216
        %1289 = vadd.xlane.f32.xlu0 %v1288
        %v1290 = vpop.xlane.xlu0 %1289
        %v1291 = vadd.f32 %v1217, %v1218
        %v1292 = vadd.f32 %v1291, %v1219
        %v1293 = vadd.f32 %v1292, %v1220
        %1294 = vadd.xlane.f32.xlu0 %v1293
        %v1295 = vpop.xlane.xlu0 %1294
        %v1296 = vadd.f32 %v1221, %v1222
        %v1297 = vadd.f32 %v1296, %v1223
        %v1298 = vadd.f32 %v1297, %v1224
        %1299 = vadd.xlane.f32.xlu0 %v1298
        %v1300 = vpop.xlane.xlu0 %1299
        %v1301 = vadd.f32 %v1225, %v1226
        %v1302 = vadd.f32 %v1301, %v1227
        %v1303 = vadd.f32 %v1302, %v1228
        %1304 = vadd.xlane.f32.xlu0 %v1303
        %v1305 = vpop.xlane.xlu0 %1304
        %v1306 = vadd.f32 %v1229, %v1230
        %v1307 = vadd.f32 %v1306, %v1231
        %v1308 = vadd.f32 %v1307, %v1232
        %1309 = vadd.xlane.f32.xlu0 %v1308
        %v1310 = vpop.xlane.xlu0 %1309
        %v1311 = vadd.f32 %v1233, %v1234
        %v1312 = vadd.f32 %v1311, %v1235
        %v1313 = vadd.f32 %v1312, %v1236
        %1314 = vadd.xlane.f32.xlu0 %v1313
        %v1315 = vpop.xlane.xlu0 %1314
        %v1316 = vadd.f32 %v1237, %v1238
        %v1317 = vadd.f32 %v1316, %v1239
        %v1318 = vadd.f32 %v1317, %v1240
        %1319 = vadd.xlane.f32.xlu0 %v1318
        %v1320 = vpop.xlane.xlu0 %1319
        %v1321 = vmul.f32 %v1245, %v1096
        %v1322 = vmul.f32 %v1250, %v1096
        %v1323 = vmul.f32 %v1255, %v1096
        %v1324 = vmul.f32 %v1260, %v1096
        %v1325 = vmul.f32 %v1265, %v1096
        %v1326 = vmul.f32 %v1270, %v1096
        %v1327 = vmul.f32 %v1275, %v1096
        %v1328 = vmul.f32 %v1280, %v1096
        %v1329 = vmul.f32 %v1285, %v1096
        %v1330 = vmul.f32 %v1290, %v1096
        %v1331 = vmul.f32 %v1295, %v1096
        %v1332 = vmul.f32 %v1300, %v1096
        %v1333 = vmul.f32 %v1305, %v1096
        %v1334 = vmul.f32 %v1310, %v1096
        %v1335 = vmul.f32 %v1315, %v1096
        %v1336 = vmul.f32 %v1320, %v1096
        %v1337 = vadd.f32 %v1321, 1e-05
        %v1338 = vadd.f32 %v1322, 1e-05
        %v1339 = vadd.f32 %v1323, 1e-05
        %v1340 = vadd.f32 %v1324, 1e-05
        %v1341 = vadd.f32 %v1325, 1e-05
        %v1342 = vadd.f32 %v1326, 1e-05
        %v1343 = vadd.f32 %v1327, 1e-05
        %v1344 = vadd.f32 %v1328, 1e-05
        %v1345 = vadd.f32 %v1329, 1e-05
        %v1346 = vadd.f32 %v1330, 1e-05
        %v1347 = vadd.f32 %v1331, 1e-05
        %v1348 = vadd.f32 %v1332, 1e-05
        %v1349 = vadd.f32 %v1333, 1e-05
        %v1350 = vadd.f32 %v1334, 1e-05
        %v1351 = vadd.f32 %v1335, 1e-05
        %v1352 = vadd.f32 %v1336, 1e-05
        %v1353 = vrsqrt.pop %v1337
        %v1354 = vrsqrt.pop %v1338
        %v1355 = vrsqrt.pop %v1339
        %v1356 = vrsqrt.pop %v1340
        %v1357 = vrsqrt.pop %v1341
        %v1358 = vrsqrt.pop %v1342
        %v1359 = vrsqrt.pop %v1343
        %v1360 = vrsqrt.pop %v1344
        %v1361 = vrsqrt.pop %v1345
        %v1362 = vrsqrt.pop %v1346
        %v1363 = vrsqrt.pop %v1347
        %v1364 = vrsqrt.pop %v1348
        %v1365 = vrsqrt.pop %v1349
        %v1366 = vrsqrt.pop %v1350
        %v1367 = vrsqrt.pop %v1351
        %v1368 = vrsqrt.pop %v1352
        %v1369 = vmul.f32 %v1113, %v1353
        %v1370 = vmul.f32 %v1114, %v1353
        %v1371 = vmul.f32 %v1115, %v1353
        %v1372 = vmul.f32 %v1116, %v1353
        %v1373 = vmul.f32 %v1117, %v1354
        %v1374 = vmul.f32 %v1118, %v1354
        %v1375 = vmul.f32 %v1119, %v1354
        %v1376 = vmul.f32 %v1120, %v1354
        %v1377 = vmul.f32 %v1121, %v1355
        %v1378 = vmul.f32 %v1122, %v1355
        %v1379 = vmul.f32 %v1123, %v1355
        %v1380 = vmul.f32 %v1124, %v1355
        %v1381 = vmul.f32 %v1125, %v1356
        %v1382 = vmul.f32 %v1126, %v1356
        %v1383 = vmul.f32 %v1127, %v1356
        %v1384 = vmul.f32 %v1128, %v1356
        %v1385 = vmul.f32 %v1129, %v1357
        %v1386 = vmul.f32 %v1130, %v1357
        %v1387 = vmul.f32 %v1131, %v1357
        %v1388 = vmul.f32 %v1132, %v1357
        %v1389 = vmul.f32 %v1133, %v1358
        %v1390 = vmul.f32 %v1134, %v1358
        %v1391 = vmul.f32 %v1135, %v1358
        %v1392 = vmul.f32 %v1136, %v1358
        %v1393 = vmul.f32 %v1137, %v1359
        %v1394 = vmul.f32 %v1138, %v1359
        %v1395 = vmul.f32 %v1139, %v1359
        %v1396 = vmul.f32 %v1140, %v1359
        %v1397 = vmul.f32 %v1141, %v1360
        %v1398 = vmul.f32 %v1142, %v1360
        %v1399 = vmul.f32 %v1143, %v1360
        %v1400 = vmul.f32 %v1144, %v1360
        %v1401 = vmul.f32 %v1145, %v1361
        %v1402 = vmul.f32 %v1146, %v1361
        %v1403 = vmul.f32 %v1147, %v1361
        %v1404 = vmul.f32 %v1148, %v1361
        %v1405 = vmul.f32 %v1149, %v1362
        %v1406 = vmul.f32 %v1150, %v1362
        %v1407 = vmul.f32 %v1151, %v1362
        %v1408 = vmul.f32 %v1152, %v1362
        %v1409 = vmul.f32 %v1153, %v1363
        %v1410 = vmul.f32 %v1154, %v1363
        %v1411 = vmul.f32 %v1155, %v1363
        %v1412 = vmul.f32 %v1156, %v1363
        %v1413 = vmul.f32 %v1157, %v1364
        %v1414 = vmul.f32 %v1158, %v1364
        %v1415 = vmul.f32 %v1159, %v1364
        %v1416 = vmul.f32 %v1160, %v1364
        %v1417 = vmul.f32 %v1161, %v1365
        %v1418 = vmul.f32 %v1162, %v1365
        %v1419 = vmul.f32 %v1163, %v1365
        %v1420 = vmul.f32 %v1164, %v1365
        %v1421 = vmul.f32 %v1165, %v1366
        %v1422 = vmul.f32 %v1166, %v1366
        %v1423 = vmul.f32 %v1167, %v1366
        %v1424 = vmul.f32 %v1168, %v1366
        %v1425 = vmul.f32 %v1169, %v1367
        %v1426 = vmul.f32 %v1170, %v1367
        %v1427 = vmul.f32 %v1171, %v1367
        %v1428 = vmul.f32 %v1172, %v1367
        %v1429 = vmul.f32 %v1173, %v1368
        %v1430 = vmul.f32 %v1174, %v1368
        %v1431 = vmul.f32 %v1175, %v1368
        %v1432 = vmul.f32 %v1176, %v1368
        %s1433 = scalar_lea.vmem [#allocation7], 1
        %v1434 = vld [vmem:[%s1433] ss:$4 sm:$0xf]
        %v1436 = vlaneseq
        %v1437 = vshrl.u32 %v1436, 7
        %v1438 = vsub.s32 0, %v1437
        %v1439 = vrot.slane %v1434, %v1438
        %v1440 = vlaneseq
        %v1441 = vshrl.u32 %v1440, 7
        %v1442 = vsub.s32 1, %v1441
        %v1443 = vrot.slane %v1434, %v1442
        %v1444 = vlaneseq
        %v1445 = vshrl.u32 %v1444, 7
        %v1446 = vsub.s32 2, %v1445
        %v1447 = vrot.slane %v1434, %v1446
        %v1448 = vlaneseq
        %v1449 = vshrl.u32 %v1448, 7
        %v1450 = vsub.s32 3, %v1449
        %v1451 = vrot.slane %v1434, %v1450
        %v1456 = vmul.f32 %v1369, %v1439
        %v1457 = vmul.f32 %v1370, %v1443
        %v1458 = vmul.f32 %v1371, %v1447
        %v1459 = vmul.f32 %v1372, %v1451
        %v1460 = vmul.f32 %v1373, %v1439
        %v1461 = vmul.f32 %v1374, %v1443
        %v1462 = vmul.f32 %v1375, %v1447
        %v1463 = vmul.f32 %v1376, %v1451
        %v1464 = vmul.f32 %v1377, %v1439
        %v1465 = vmul.f32 %v1378, %v1443
        %v1466 = vmul.f32 %v1379, %v1447
        %v1467 = vmul.f32 %v1380, %v1451
        %v1468 = vmul.f32 %v1381, %v1439
        %v1469 = vmul.f32 %v1382, %v1443
        %v1470 = vmul.f32 %v1383, %v1447
        %v1471 = vmul.f32 %v1384, %v1451
        %v1472 = vmul.f32 %v1385, %v1439
        %v1473 = vmul.f32 %v1386, %v1443
        %v1474 = vmul.f32 %v1387, %v1447
        %v1475 = vmul.f32 %v1388, %v1451
        %v1476 = vmul.f32 %v1389, %v1439
        %v1477 = vmul.f32 %v1390, %v1443
        %v1478 = vmul.f32 %v1391, %v1447
        %v1479 = vmul.f32 %v1392, %v1451
        %v1480 = vmul.f32 %v1393, %v1439
        %v1481 = vmul.f32 %v1394, %v1443
        %v1482 = vmul.f32 %v1395, %v1447
        %v1483 = vmul.f32 %v1396, %v1451
        %v1484 = vmul.f32 %v1397, %v1439
        %v1485 = vmul.f32 %v1398, %v1443
        %v1486 = vmul.f32 %v1399, %v1447
        %v1487 = vmul.f32 %v1400, %v1451
        %v1488 = vmul.f32 %v1401, %v1439
        %v1489 = vmul.f32 %v1402, %v1443
        %v1490 = vmul.f32 %v1403, %v1447
        %v1491 = vmul.f32 %v1404, %v1451
        %v1492 = vmul.f32 %v1405, %v1439
        %v1493 = vmul.f32 %v1406, %v1443
        %v1494 = vmul.f32 %v1407, %v1447
        %v1495 = vmul.f32 %v1408, %v1451
        %v1496 = vmul.f32 %v1409, %v1439
        %v1497 = vmul.f32 %v1410, %v1443
        %v1498 = vmul.f32 %v1411, %v1447
        %v1499 = vmul.f32 %v1412, %v1451
        %v1500 = vmul.f32 %v1413, %v1439
        %v1501 = vmul.f32 %v1414, %v1443
        %v1502 = vmul.f32 %v1415, %v1447
        %v1503 = vmul.f32 %v1416, %v1451
        %v1504 = vmul.f32 %v1417, %v1439
        %v1505 = vmul.f32 %v1418, %v1443
        %v1506 = vmul.f32 %v1419, %v1447
        %v1507 = vmul.f32 %v1420, %v1451
        %v1508 = vmul.f32 %v1421, %v1439
        %v1509 = vmul.f32 %v1422, %v1443
        %v1510 = vmul.f32 %v1423, %v1447
        %v1511 = vmul.f32 %v1424, %v1451
        %v1512 = vmul.f32 %v1425, %v1439
        %v1513 = vmul.f32 %v1426, %v1443
        %v1514 = vmul.f32 %v1427, %v1447
        %v1515 = vmul.f32 %v1428, %v1451
        %v1516 = vmul.f32 %v1429, %v1439
        %v1517 = vmul.f32 %v1430, %v1443
        %v1518 = vmul.f32 %v1431, %v1447
        %v1519 = vmul.f32 %v1432, %v1451
        %s1520 = scalar_lea.vmem [#allocation7], 2
        %v1521 = vld [vmem:[%s1520] ss:$4 sm:$0xf]
        %v1523 = vlaneseq
        %v1524 = vshrl.u32 %v1523, 7
        %v1525 = vsub.s32 0, %v1524
        %v1526 = vrot.slane %v1521, %v1525
        %v1527 = vlaneseq
        %v1528 = vshrl.u32 %v1527, 7
        %v1529 = vsub.s32 1, %v1528
        %v1530 = vrot.slane %v1521, %v1529
        %v1531 = vlaneseq
        %v1532 = vshrl.u32 %v1531, 7
        %v1533 = vsub.s32 2, %v1532
        %v1534 = vrot.slane %v1521, %v1533
        %v1535 = vlaneseq
        %v1536 = vshrl.u32 %v1535, 7
        %v1537 = vsub.s32 3, %v1536
        %v1538 = vrot.slane %v1521, %v1537
        %v1543 = vadd.f32 %v1456, %v1526
        %v1544 = vadd.f32 %v1457, %v1530
        %v1545 = vadd.f32 %v1458, %v1534
        %v1546 = vadd.f32 %v1459, %v1538
        %v1547 = vadd.f32 %v1460, %v1526
        %v1548 = vadd.f32 %v1461, %v1530
        %v1549 = vadd.f32 %v1462, %v1534
        %v1550 = vadd.f32 %v1463, %v1538
        %v1551 = vadd.f32 %v1464, %v1526
        %v1552 = vadd.f32 %v1465, %v1530
        %v1553 = vadd.f32 %v1466, %v1534
        %v1554 = vadd.f32 %v1467, %v1538
        %v1555 = vadd.f32 %v1468, %v1526
        %v1556 = vadd.f32 %v1469, %v1530
        %v1557 = vadd.f32 %v1470, %v1534
        %v1558 = vadd.f32 %v1471, %v1538
        %v1559 = vadd.f32 %v1472, %v1526
        %v1560 = vadd.f32 %v1473, %v1530
        %v1561 = vadd.f32 %v1474, %v1534
        %v1562 = vadd.f32 %v1475, %v1538
        %v1563 = vadd.f32 %v1476, %v1526
        %v1564 = vadd.f32 %v1477, %v1530
        %v1565 = vadd.f32 %v1478, %v1534
        %v1566 = vadd.f32 %v1479, %v1538
        %v1567 = vadd.f32 %v1480, %v1526
        %v1568 = vadd.f32 %v1481, %v1530
        %v1569 = vadd.f32 %v1482, %v1534
        %v1570 = vadd.f32 %v1483, %v1538
        %v1571 = vadd.f32 %v1484, %v1526
        %v1572 = vadd.f32 %v1485, %v1530
        %v1573 = vadd.f32 %v1486, %v1534
        %v1574 = vadd.f32 %v1487, %v1538
        %v1575 = vadd.f32 %v1488, %v1526
        %v1576 = vadd.f32 %v1489, %v1530
        %v1577 = vadd.f32 %v1490, %v1534
        %v1578 = vadd.f32 %v1491, %v1538
        %v1579 = vadd.f32 %v1492, %v1526
        %v1580 = vadd.f32 %v1493, %v1530
        %v1581 = vadd.f32 %v1494, %v1534
        %v1582 = vadd.f32 %v1495, %v1538
        %v1583 = vadd.f32 %v1496, %v1526
        %v1584 = vadd.f32 %v1497, %v1530
        %v1585 = vadd.f32 %v1498, %v1534
        %v1586 = vadd.f32 %v1499, %v1538
        %v1587 = vadd.f32 %v1500, %v1526
        %v1588 = vadd.f32 %v1501, %v1530
        %v1589 = vadd.f32 %v1502, %v1534
        %v1590 = vadd.f32 %v1503, %v1538
        %v1591 = vadd.f32 %v1504, %v1526
        %v1592 = vadd.f32 %v1505, %v1530
        %v1593 = vadd.f32 %v1506, %v1534
        %v1594 = vadd.f32 %v1507, %v1538
        %v1595 = vadd.f32 %v1508, %v1526
        %v1596 = vadd.f32 %v1509, %v1530
        %v1597 = vadd.f32 %v1510, %v1534
        %v1598 = vadd.f32 %v1511, %v1538
        %v1599 = vadd.f32 %v1512, %v1526
        %v1600 = vadd.f32 %v1513, %v1530
        %v1601 = vadd.f32 %v1514, %v1534
        %v1602 = vadd.f32 %v1515, %v1538
        %v1603 = vadd.f32 %v1516, %v1526
        %v1604 = vadd.f32 %v1517, %v1530
        %v1605 = vadd.f32 %v1518, %v1534
        %v1606 = vadd.f32 %v1519, %v1538
        %v1607 = vmax.f32 %v1543, 0.0
        %v1608 = vmax.f32 %v1544, 0.0
        %v1609 = vmax.f32 %v1545, 0.0
        %v1610 = vmax.f32 %v1546, 0.0
        %v1611 = vmax.f32 %v1547, 0.0
        %v1612 = vmax.f32 %v1548, 0.0
        %v1613 = vmax.f32 %v1549, 0.0
        %v1614 = vmax.f32 %v1550, 0.0
        %v1615 = vmax.f32 %v1551, 0.0
        %v1616 = vmax.f32 %v1552, 0.0
        %v1617 = vmax.f32 %v1553, 0.0
        %v1618 = vmax.f32 %v1554, 0.0
        %v1619 = vmax.f32 %v1555, 0.0
        %v1620 = vmax.f32 %v1556, 0.0
        %v1621 = vmax.f32 %v1557, 0.0
        %v1622 = vmax.f32 %v1558, 0.0
        %v1623 = vmax.f32 %v1559, 0.0
        %v1624 = vmax.f32 %v1560, 0.0
        %v1625 = vmax.f32 %v1561, 0.0
        %v1626 = vmax.f32 %v1562, 0.0
        %v1627 = vmax.f32 %v1563, 0.0
        %v1628 = vmax.f32 %v1564, 0.0
        %v1629 = vmax.f32 %v1565, 0.0
        %v1630 = vmax.f32 %v1566, 0.0
        %v1631 = vmax.f32 %v1567, 0.0
        %v1632 = vmax.f32 %v1568, 0.0
        %v1633 = vmax.f32 %v1569, 0.0
        %v1634 = vmax.f32 %v1570, 0.0
        %v1635 = vmax.f32 %v1571, 0.0
        %v1636 = vmax.f32 %v1572, 0.0
        %v1637 = vmax.f32 %v1573, 0.0
        %v1638 = vmax.f32 %v1574, 0.0
        %v1639 = vmax.f32 %v1575, 0.0
        %v1640 = vmax.f32 %v1576, 0.0
        %v1641 = vmax.f32 %v1577, 0.0
        %v1642 = vmax.f32 %v1578, 0.0
        %v1643 = vmax.f32 %v1579, 0.0
        %v1644 = vmax.f32 %v1580, 0.0
        %v1645 = vmax.f32 %v1581, 0.0
        %v1646 = vmax.f32 %v1582, 0.0
        %v1647 = vmax.f32 %v1583, 0.0
        %v1648 = vmax.f32 %v1584, 0.0
        %v1649 = vmax.f32 %v1585, 0.0
        %v1650 = vmax.f32 %v1586, 0.0
        %v1651 = vmax.f32 %v1587, 0.0
        %v1652 = vmax.f32 %v1588, 0.0
        %v1653 = vmax.f32 %v1589, 0.0
        %v1654 = vmax.f32 %v1590, 0.0
        %v1655 = vmax.f32 %v1591, 0.0
        %v1656 = vmax.f32 %v1592, 0.0
        %v1657 = vmax.f32 %v1593, 0.0
        %v1658 = vmax.f32 %v1594, 0.0
        %v1659 = vmax.f32 %v1595, 0.0
        %v1660 = vmax.f32 %v1596, 0.0
        %v1661 = vmax.f32 %v1597, 0.0
        %v1662 = vmax.f32 %v1598, 0.0
        %v1663 = vmax.f32 %v1599, 0.0
        %v1664 = vmax.f32 %v1600, 0.0
        %v1665 = vmax.f32 %v1601, 0.0
        %v1666 = vmax.f32 %v1602, 0.0
        %v1667 = vmax.f32 %v1603, 0.0
        %v1668 = vmax.f32 %v1604, 0.0
        %v1669 = vmax.f32 %v1605, 0.0
        %v1670 = vmax.f32 %v1606, 0.0
        %v1671 = vpack.c.bf16 %v1611, %v1607
        %v1672 = vpack.c.bf16 %v1612, %v1608
        %v1673 = vpack.c.bf16 %v1613, %v1609
        %v1674 = vpack.c.bf16 %v1614, %v1610
        %v1675 = vpack.c.bf16 %v1619, %v1615
        %v1676 = vpack.c.bf16 %v1620, %v1616
        %v1677 = vpack.c.bf16 %v1621, %v1617
        %v1678 = vpack.c.bf16 %v1622, %v1618
        %v1679 = vpack.c.bf16 %v1627, %v1623
        %v1680 = vpack.c.bf16 %v1628, %v1624
        %v1681 = vpack.c.bf16 %v1629, %v1625
        %v1682 = vpack.c.bf16 %v1630, %v1626
        %v1683 = vpack.c.bf16 %v1635, %v1631
        %v1684 = vpack.c.bf16 %v1636, %v1632
        %v1685 = vpack.c.bf16 %v1637, %v1633
        %v1686 = vpack.c.bf16 %v1638, %v1634
        %v1687 = vpack.c.bf16 %v1643, %v1639
        %v1688 = vpack.c.bf16 %v1644, %v1640
        %v1689 = vpack.c.bf16 %v1645, %v1641
        %v1690 = vpack.c.bf16 %v1646, %v1642
        %v1691 = vpack.c.bf16 %v1651, %v1647
        %v1692 = vpack.c.bf16 %v1652, %v1648
        %v1693 = vpack.c.bf16 %v1653, %v1649
        %v1694 = vpack.c.bf16 %v1654, %v1650
        %v1695 = vpack.c.bf16 %v1659, %v1655
        %v1696 = vpack.c.bf16 %v1660, %v1656
        %v1697 = vpack.c.bf16 %v1661, %v1657
        %v1698 = vpack.c.bf16 %v1662, %v1658
        %v1699 = vpack.c.bf16 %v1667, %v1663
        %v1700 = vpack.c.bf16 %v1668, %v1664
        %v1701 = vpack.c.bf16 %v1669, %v1665
        %v1702 = vpack.c.bf16 %v1670, %v1666
        %v1703 = vld [vmem:[#allocation8] sm:$0xff]
        %v1704 = vld [vmem:[#allocation8 + $0x8] sm:$0xff]
        %v1705 = vld [vmem:[#allocation8 + $0x10] sm:$0xff]
        %v1706 = vld [vmem:[#allocation8 + $0x18] sm:$0xff]
        %v1707 = vld [vmem:[#allocation8 + $0x20] sm:$0xff]
        %v1708 = vld [vmem:[#allocation8 + $0x28] sm:$0xff]
        %v1709 = vld [vmem:[#allocation8 + $0x30] sm:$0xff]
        %v1710 = vld [vmem:[#allocation8 + $0x38] sm:$0xff]
        %v1711 = vld [vmem:[#allocation8 + $0x40] sm:$0xff]
        %v1712 = vld [vmem:[#allocation8 + $0x48] sm:$0xff]
        %v1713 = vld [vmem:[#allocation8 + $0x50] sm:$0xff]
        %v1714 = vld [vmem:[#allocation8 + $0x58] sm:$0xff]
        %v1715 = vld [vmem:[#allocation8 + $0x60] sm:$0xff]
        %v1716 = vld [vmem:[#allocation8 + $0x68] sm:$0xff]
        %v1717 = vld [vmem:[#allocation8 + $0x70] sm:$0xff]
        %v1718 = vld [vmem:[#allocation8 + $0x78] sm:$0xff]
        %v1719 = vld [vmem:[#allocation8 + $0x80] sm:$0xff]
        %v1720 = vld [vmem:[#allocation8 + $0x88] sm:$0xff]
        %v1721 = vld [vmem:[#allocation8 + $0x90] sm:$0xff]
        %v1722 = vld [vmem:[#allocation8 + $0x98] sm:$0xff]
        %v1723 = vld [vmem:[#allocation8 + $0xa0] sm:$0xff]
        %v1724 = vld [vmem:[#allocation8 + $0xa8] sm:$0xff]
        %v1725 = vld [vmem:[#allocation8 + $0xb0] sm:$0xff]
        %v1726 = vld [vmem:[#allocation8 + $0xb8] sm:$0xff]
        %v1727 = vld [vmem:[#allocation8 + $0xc0] sm:$0xff]
        %v1728 = vld [vmem:[#allocation8 + $0xc8] sm:$0xff]
        %v1729 = vld [vmem:[#allocation8 + $0xd0] sm:$0xff]
        %v1730 = vld [vmem:[#allocation8 + $0xd8] sm:$0xff]
        %v1731 = vld [vmem:[#allocation8 + $0xe0] sm:$0xff]
        %v1732 = vld [vmem:[#allocation8 + $0xe8] sm:$0xff]
        %v1733 = vld [vmem:[#allocation8 + $0xf0] sm:$0xff]
        %v1734 = vld [vmem:[#allocation8 + $0xf8] sm:$0xff]
        %v1735 = vld [vmem:[#allocation8 + $0x100] sm:$0xff]
        %v1736 = vld [vmem:[#allocation8 + $0x108] sm:$0xff]
        %v1737 = vld [vmem:[#allocation8 + $0x110] sm:$0xff]
        %v1738 = vld [vmem:[#allocation8 + $0x118] sm:$0xff]
        %v1739 = vld [vmem:[#allocation8 + $0x120] sm:$0xff]
        %v1740 = vld [vmem:[#allocation8 + $0x128] sm:$0xff]
        %v1741 = vld [vmem:[#allocation8 + $0x130] sm:$0xff]
        %v1742 = vld [vmem:[#allocation8 + $0x138] sm:$0xff]
        %v1743 = vld [vmem:[#allocation8 + $0x140] sm:$0xff]
        %v1744 = vld [vmem:[#allocation8 + $0x148] sm:$0xff]
        %v1745 = vld [vmem:[#allocation8 + $0x150] sm:$0xff]
        %v1746 = vld [vmem:[#allocation8 + $0x158] sm:$0xff]
        %v1747 = vld [vmem:[#allocation8 + $0x160] sm:$0xff]
        %v1748 = vld [vmem:[#allocation8 + $0x168] sm:$0xff]
        %v1749 = vld [vmem:[#allocation8 + $0x170] sm:$0xff]
        %v1750 = vld [vmem:[#allocation8 + $0x178] sm:$0xff]
        %v1751 = vld [vmem:[#allocation8 + $0x180] sm:$0xff]
        %v1752 = vld [vmem:[#allocation8 + $0x188] sm:$0xff]
        %v1753 = vld [vmem:[#allocation8 + $0x190] sm:$0xff]
        %v1754 = vld [vmem:[#allocation8 + $0x198] sm:$0xff]
        %v1755 = vld [vmem:[#allocation8 + $0x1a0] sm:$0xff]
        %v1756 = vld [vmem:[#allocation8 + $0x1a8] sm:$0xff]
        %v1757 = vld [vmem:[#allocation8 + $0x1b0] sm:$0xff]
        %v1758 = vld [vmem:[#allocation8 + $0x1b8] sm:$0xff]
        %v1759 = vld [vmem:[#allocation8 + $0x1c0] sm:$0xff]
        %v1760 = vld [vmem:[#allocation8 + $0x1c8] sm:$0xff]
        %v1761 = vld [vmem:[#allocation8 + $0x1d0] sm:$0xff]
        %v1762 = vld [vmem:[#allocation8 + $0x1d8] sm:$0xff]
        %v1763 = vld [vmem:[#allocation8 + $0x1e0] sm:$0xff]
        %v1764 = vld [vmem:[#allocation8 + $0x1e8] sm:$0xff]
        %v1765 = vld [vmem:[#allocation8 + $0x1f0] sm:$0xff]
        %v1766 = vld [vmem:[#allocation8 + $0x1f8] sm:$0xff]
        %v1767 = vld [vmem:[%s4] ss:$4 sm:$0x3]
        %v1769 = vlaneseq
        %v1770 = vshrl.u32 %v1769, 7
        %v1771 = vsub.s32 0, %v1770
        %v1772 = vrot.slane %v1767, %v1771
        %v1773 = vlaneseq
        %v1774 = vshrl.u32 %v1773, 7
        %v1775 = vsub.s32 1, %v1774
        %v1776 = vrot.slane %v1767, %v1775
        %v1843 = vunpack.c.l.b16 %v1703
        %v1844 = vunpack.c.h.b16 %v1703
        %v1845 = vunpack.c.l.b16 %v1704
        %v1846 = vunpack.c.h.b16 %v1704
        %v1847 = vunpack.c.l.b16 %v1705
        %v1848 = vunpack.c.h.b16 %v1705
        %v1849 = vunpack.c.l.b16 %v1706
        %v1850 = vunpack.c.h.b16 %v1706
        %v1851 = vunpack.c.l.b16 %v1707
        %v1852 = vunpack.c.h.b16 %v1707
        %v1853 = vunpack.c.l.b16 %v1708
        %v1854 = vunpack.c.h.b16 %v1708
        %v1855 = vunpack.c.l.b16 %v1709
        %v1856 = vunpack.c.h.b16 %v1709
        %v1857 = vunpack.c.l.b16 %v1710
        %v1858 = vunpack.c.h.b16 %v1710
        %v1859 = vunpack.c.l.b16 %v1711
        %v1860 = vunpack.c.h.b16 %v1711
        %v1861 = vunpack.c.l.b16 %v1712
        %v1862 = vunpack.c.h.b16 %v1712
        %v1863 = vunpack.c.l.b16 %v1713
        %v1864 = vunpack.c.h.b16 %v1713
        %v1865 = vunpack.c.l.b16 %v1714
        %v1866 = vunpack.c.h.b16 %v1714
        %v1867 = vunpack.c.l.b16 %v1715
        %v1868 = vunpack.c.h.b16 %v1715
        %v1869 = vunpack.c.l.b16 %v1716
        %v1870 = vunpack.c.h.b16 %v1716
        %v1871 = vunpack.c.l.b16 %v1717
        %v1872 = vunpack.c.h.b16 %v1717
        %v1873 = vunpack.c.l.b16 %v1718
        %v1874 = vunpack.c.h.b16 %v1718
        %v1875 = vunpack.c.l.b16 %v1719
        %v1876 = vunpack.c.h.b16 %v1719
        %v1877 = vunpack.c.l.b16 %v1720
        %v1878 = vunpack.c.h.b16 %v1720
        %v1879 = vunpack.c.l.b16 %v1721
        %v1880 = vunpack.c.h.b16 %v1721
        %v1881 = vunpack.c.l.b16 %v1722
        %v1882 = vunpack.c.h.b16 %v1722
        %v1883 = vunpack.c.l.b16 %v1723
        %v1884 = vunpack.c.h.b16 %v1723
        %v1885 = vunpack.c.l.b16 %v1724
        %v1886 = vunpack.c.h.b16 %v1724
        %v1887 = vunpack.c.l.b16 %v1725
        %v1888 = vunpack.c.h.b16 %v1725
        %v1889 = vunpack.c.l.b16 %v1726
        %v1890 = vunpack.c.h.b16 %v1726
        %v1891 = vunpack.c.l.b16 %v1727
        %v1892 = vunpack.c.h.b16 %v1727
        %v1893 = vunpack.c.l.b16 %v1728
        %v1894 = vunpack.c.h.b16 %v1728
        %v1895 = vunpack.c.l.b16 %v1729
        %v1896 = vunpack.c.h.b16 %v1729
        %v1897 = vunpack.c.l.b16 %v1730
        %v1898 = vunpack.c.h.b16 %v1730
        %v1899 = vunpack.c.l.b16 %v1731
        %v1900 = vunpack.c.h.b16 %v1731
        %v1901 = vunpack.c.l.b16 %v1732
        %v1902 = vunpack.c.h.b16 %v1732
        %v1903 = vunpack.c.l.b16 %v1733
        %v1904 = vunpack.c.h.b16 %v1733
        %v1905 = vunpack.c.l.b16 %v1734
        %v1906 = vunpack.c.h.b16 %v1734
        %v1907 = vunpack.c.l.b16 %v1735
        %v1908 = vunpack.c.h.b16 %v1735
        %v1909 = vunpack.c.l.b16 %v1736
        %v1910 = vunpack.c.h.b16 %v1736
        %v1911 = vunpack.c.l.b16 %v1737
        %v1912 = vunpack.c.h.b16 %v1737
        %v1913 = vunpack.c.l.b16 %v1738
        %v1914 = vunpack.c.h.b16 %v1738
        %v1915 = vunpack.c.l.b16 %v1739
        %v1916 = vunpack.c.h.b16 %v1739
        %v1917 = vunpack.c.l.b16 %v1740
        %v1918 = vunpack.c.h.b16 %v1740
        %v1919 = vunpack.c.l.b16 %v1741
        %v1920 = vunpack.c.h.b16 %v1741
        %v1921 = vunpack.c.l.b16 %v1742
        %v1922 = vunpack.c.h.b16 %v1742
        %v1923 = vunpack.c.l.b16 %v1743
        %v1924 = vunpack.c.h.b16 %v1743
        %v1925 = vunpack.c.l.b16 %v1744
        %v1926 = vunpack.c.h.b16 %v1744
        %v1927 = vunpack.c.l.b16 %v1745
        %v1928 = vunpack.c.h.b16 %v1745
        %v1929 = vunpack.c.l.b16 %v1746
        %v1930 = vunpack.c.h.b16 %v1746
        %v1931 = vunpack.c.l.b16 %v1747
        %v1932 = vunpack.c.h.b16 %v1747
        %v1933 = vunpack.c.l.b16 %v1748
        %v1934 = vunpack.c.h.b16 %v1748
        %v1935 = vunpack.c.l.b16 %v1749
        %v1936 = vunpack.c.h.b16 %v1749
        %v1937 = vunpack.c.l.b16 %v1750
        %v1938 = vunpack.c.h.b16 %v1750
        %v1939 = vunpack.c.l.b16 %v1751
        %v1940 = vunpack.c.h.b16 %v1751
        %v1941 = vunpack.c.l.b16 %v1752
        %v1942 = vunpack.c.h.b16 %v1752
        %v1943 = vunpack.c.l.b16 %v1753
        %v1944 = vunpack.c.h.b16 %v1753
        %v1945 = vunpack.c.l.b16 %v1754
        %v1946 = vunpack.c.h.b16 %v1754
        %v1947 = vunpack.c.l.b16 %v1755
        %v1948 = vunpack.c.h.b16 %v1755
        %v1949 = vunpack.c.l.b16 %v1756
        %v1950 = vunpack.c.h.b16 %v1756
        %v1951 = vunpack.c.l.b16 %v1757
        %v1952 = vunpack.c.h.b16 %v1757
        %v1953 = vunpack.c.l.b16 %v1758
        %v1954 = vunpack.c.h.b16 %v1758
        %v1955 = vunpack.c.l.b16 %v1759
        %v1956 = vunpack.c.h.b16 %v1759
        %v1957 = vunpack.c.l.b16 %v1760
        %v1958 = vunpack.c.h.b16 %v1760
        %v1959 = vunpack.c.l.b16 %v1761
        %v1960 = vunpack.c.h.b16 %v1761
        %v1961 = vunpack.c.l.b16 %v1762
        %v1962 = vunpack.c.h.b16 %v1762
        %v1963 = vunpack.c.l.b16 %v1763
        %v1964 = vunpack.c.h.b16 %v1763
        %v1965 = vunpack.c.l.b16 %v1764
        %v1966 = vunpack.c.h.b16 %v1764
        %v1967 = vunpack.c.l.b16 %v1765
        %v1968 = vunpack.c.h.b16 %v1765
        %v1969 = vunpack.c.l.b16 %v1766
        %v1970 = vunpack.c.h.b16 %v1766
        %v1971 = vpack.c.b16 %v1845, %v1843
        %v1972 = vpack.c.b16 %v1846, %v1844
        %v1973 = vpack.c.b16 %v1849, %v1847
        %v1974 = vpack.c.b16 %v1850, %v1848
        %v1975 = vpack.c.b16 %v1853, %v1851
        %v1976 = vpack.c.b16 %v1854, %v1852
        %v1977 = vpack.c.b16 %v1857, %v1855
        %v1978 = vpack.c.b16 %v1858, %v1856
        %v1979 = vpack.c.b16 %v1861, %v1859
        %v1980 = vpack.c.b16 %v1862, %v1860
        %v1981 = vpack.c.b16 %v1865, %v1863
        %v1982 = vpack.c.b16 %v1866, %v1864
        %v1983 = vpack.c.b16 %v1869, %v1867
        %v1984 = vpack.c.b16 %v1870, %v1868
        %v1985 = vpack.c.b16 %v1873, %v1871
        %v1986 = vpack.c.b16 %v1874, %v1872
        %v1987 = vpack.c.b16 %v1877, %v1875
        %v1988 = vpack.c.b16 %v1878, %v1876
        %v1989 = vpack.c.b16 %v1881, %v1879
        %v1990 = vpack.c.b16 %v1882, %v1880
        %v1991 = vpack.c.b16 %v1885, %v1883
        %v1992 = vpack.c.b16 %v1886, %v1884
        %v1993 = vpack.c.b16 %v1889, %v1887
        %v1994 = vpack.c.b16 %v1890, %v1888
        %v1995 = vpack.c.b16 %v1893, %v1891
        %v1996 = vpack.c.b16 %v1894, %v1892
        %v1997 = vpack.c.b16 %v1897, %v1895
        %v1998 = vpack.c.b16 %v1898, %v1896
        %v1999 = vpack.c.b16 %v1901, %v1899
        %v2000 = vpack.c.b16 %v1902, %v1900
        %v2001 = vpack.c.b16 %v1905, %v1903
        %v2002 = vpack.c.b16 %v1906, %v1904
        %v2003 = vpack.c.b16 %v1909, %v1907
        %v2004 = vpack.c.b16 %v1910, %v1908
        %v2005 = vpack.c.b16 %v1913, %v1911
        %v2006 = vpack.c.b16 %v1914, %v1912
        %v2007 = vpack.c.b16 %v1917, %v1915
        %v2008 = vpack.c.b16 %v1918, %v1916
        %v2009 = vpack.c.b16 %v1921, %v1919
        %v2010 = vpack.c.b16 %v1922, %v1920
        %v2011 = vpack.c.b16 %v1925, %v1923
        %v2012 = vpack.c.b16 %v1926, %v1924
        %v2013 = vpack.c.b16 %v1929, %v1927
        %v2014 = vpack.c.b16 %v1930, %v1928
        %v2015 = vpack.c.b16 %v1933, %v1931
        %v2016 = vpack.c.b16 %v1934, %v1932
        %v2017 = vpack.c.b16 %v1937, %v1935
        %v2018 = vpack.c.b16 %v1938, %v1936
        %v2019 = vpack.c.b16 %v1941, %v1939
        %v2020 = vpack.c.b16 %v1942, %v1940
        %v2021 = vpack.c.b16 %v1945, %v1943
        %v2022 = vpack.c.b16 %v1946, %v1944
        %v2023 = vpack.c.b16 %v1949, %v1947
        %v2024 = vpack.c.b16 %v1950, %v1948
        %v2025 = vpack.c.b16 %v1953, %v1951
        %v2026 = vpack.c.b16 %v1954, %v1952
        %v2027 = vpack.c.b16 %v1957, %v1955
        %v2028 = vpack.c.b16 %v1958, %v1956
        %v2029 = vpack.c.b16 %v1961, %v1959
        %v2030 = vpack.c.b16 %v1962, %v1960
        %v2031 = vpack.c.b16 %v1965, %v1963
        %v2032 = vpack.c.b16 %v1966, %v1964
        %v2033 = vpack.c.b16 %v1969, %v1967
        %v2034 = vpack.c.b16 %v1970, %v1968
        %2099 = vmatprep.subr.bf16.mxu0 %v1972
        %2100 = vmatpush1.bf16.msra.mxu0 %v1971
        %2101 = vmatprep.subr.bf16.mxu0 %v1974
        %2102 = vmatpush1.bf16.msra.mxu0 %v1973
        %2103 = vmatprep.subr.bf16.mxu0 %v1976
        %2104 = vmatpush1.bf16.msra.mxu0 %v1975
        %2105 = vmatprep.subr.bf16.mxu0 %v1978
        %2106 = vmatpush1.bf16.msra.mxu0 %v1977
        %2107 = vmatprep.subr.bf16.mxu0 %v1980
        %2108 = vmatpush1.bf16.msra.mxu0 %v1979
        %2109 = vmatprep.subr.bf16.mxu0 %v1982
        %2110 = vmatpush1.bf16.msra.mxu0 %v1981
        %2111 = vmatprep.subr.bf16.mxu0 %v1984
        %2112 = vmatpush1.bf16.msra.mxu0 %v1983
        %2113 = vmatprep.subr.bf16.mxu0 %v1986
        %2114 = vmatpush1.bf16.msra.mxu0 %v1985
        %2115 = vmatprep.subr.bf16.mxu0 %v1988
        %2116 = vmatpush1.bf16.msra.mxu0 %v1987
        %2117 = vmatprep.subr.bf16.mxu0 %v1990
        %2118 = vmatpush1.bf16.msra.mxu0 %v1989
        %2119 = vmatprep.subr.bf16.mxu0 %v1992
        %2120 = vmatpush1.bf16.msra.mxu0 %v1991
        %2121 = vmatprep.subr.bf16.mxu0 %v1994
        %2122 = vmatpush1.bf16.msra.mxu0 %v1993
        %2123 = vmatprep.subr.bf16.mxu0 %v1996
        %2124 = vmatpush1.bf16.msra.mxu0 %v1995
        %2125 = vmatprep.subr.bf16.mxu0 %v1998
        %2126 = vmatpush1.bf16.msra.mxu0 %v1997
        %2127 = vmatprep.subr.bf16.mxu0 %v2000
        %2128 = vmatpush1.bf16.msra.mxu0 %v1999
        %2129 = vmatprep.subr.bf16.mxu0 %v2002
        %2130 = vmatpush1.bf16.msra.mxu0 %v2001
        %2131 = vmatprep.mubr.bf16.mxu0 %v1672
        %2132 = vmatmul.mubr.bf16.gmra.mrb[0].mxu0 %v1671
        %v2133 = vpop.f32.mrb[0].mxu0
        %v2134 = vadd.f32 %v1772, %v2133
        %v2135 = vpop.f32.mrb[0].mxu0
        %v2136 = vadd.f32 %v1776, %v2135
        %v2137 = vpop.f32.mrb[0].mxu0
        %v2138 = vadd.f32 %v1772, %v2137
        %v2139 = vpop.f32.mrb[0].mxu0
        %v2140 = vadd.f32 %v1776, %v2139
        %2141 = vmatprep.mubr.bf16.mxu0 %v1676
        %2142 = vmatmul.mubr.bf16.gmra.mrb[0].mxu0 %v1675
        %v2143 = vpop.f32.mrb[0].mxu0
        %v2144 = vadd.f32 %v1772, %v2143
        %v2145 = vpop.f32.mrb[0].mxu0
        %v2146 = vadd.f32 %v1776, %v2145
        %v2147 = vpop.f32.mrb[0].mxu0
        %v2148 = vadd.f32 %v1772, %v2147
        %v2149 = vpop.f32.mrb[0].mxu0
        %v2150 = vadd.f32 %v1776, %v2149
        %2151 = vmatprep.mubr.bf16.mxu0 %v1680
        %2152 = vmatmul.mubr.bf16.gmra.mrb[0].mxu0 %v1679
        %v2153 = vpop.f32.mrb[0].mxu0
        %v2154 = vadd.f32 %v1772, %v2153
        %v2155 = vpop.f32.mrb[0].mxu0
        %v2156 = vadd.f32 %v1776, %v2155
        %v2157 = vpop.f32.mrb[0].mxu0
        %v2158 = vadd.f32 %v1772, %v2157
        %v2159 = vpop.f32.mrb[0].mxu0
        %v2160 = vadd.f32 %v1776, %v2159
        %2161 = vmatprep.mubr.bf16.mxu0 %v1684
        %2162 = vmatmul.mubr.bf16.gmra.mrb[0].mxu0 %v1683
        %v2163 = vpop.f32.mrb[0].mxu0
        %v2164 = vadd.f32 %v1772, %v2163
        %v2165 = vpop.f32.mrb[0].mxu0
        %v2166 = vadd.f32 %v1776, %v2165
        %v2167 = vpop.f32.mrb[0].mxu0
        %v2168 = vadd.f32 %v1772, %v2167
        %v2169 = vpop.f32.mrb[0].mxu0
        %v2170 = vadd.f32 %v1776, %v2169
        %2171 = vmatprep.mubr.bf16.mxu0 %v1688
        %2172 = vmatmul.mubr.bf16.gmra.mrb[0].mxu0 %v1687
        %v2173 = vpop.f32.mrb[0].mxu0
        %v2174 = vadd.f32 %v1772, %v2173
        %v2175 = vpop.f32.mrb[0].mxu0
        %v2176 = vadd.f32 %v1776, %v2175
        %v2177 = vpop.f32.mrb[0].mxu0
        %v2178 = vadd.f32 %v1772, %v2177
        %v2179 = vpop.f32.mrb[0].mxu0
        %v2180 = vadd.f32 %v1776, %v2179
        %2181 = vmatprep.mubr.bf16.mxu0 %v1692
        %2182 = vmatmul.mubr.bf16.gmra.mrb[0].mxu0 %v1691
        %v2183 = vpop.f32.mrb[0].mxu0
        %v2184 = vadd.f32 %v1772, %v2183
        %v2185 = vpop.f32.mrb[0].mxu0
        %v2186 = vadd.f32 %v1776, %v2185
        %v2187 = vpop.f32.mrb[0].mxu0
        %v2188 = vadd.f32 %v1772, %v2187
        %v2189 = vpop.f32.mrb[0].mxu0
        %v2190 = vadd.f32 %v1776, %v2189
        %2191 = vmatprep.mubr.bf16.mxu0 %v1696
        %2192 = vmatmul.mubr.bf16.gmra.mrb[0].mxu0 %v1695
        %v2193 = vpop.f32.mrb[0].mxu0
        %v2194 = vadd.f32 %v1772, %v2193
        %v2195 = vpop.f32.mrb[0].mxu0
        %v2196 = vadd.f32 %v1776, %v2195
        %v2197 = vpop.f32.mrb[0].mxu0
        %v2198 = vadd.f32 %v1772, %v2197
        %v2199 = vpop.f32.mrb[0].mxu0
        %v2200 = vadd.f32 %v1776, %v2199
        %2201 = vmatprep.mubr.bf16.mxu0 %v1700
        %2202 = vmatmul.mubr.bf16.gmra.mrb[0].mxu0 %v1699
        %v2203 = vpop.f32.mrb[0].mxu0
        %v2204 = vadd.f32 %v1772, %v2203
        %v2205 = vpop.f32.mrb[0].mxu0
        %v2206 = vadd.f32 %v1776, %v2205
        %v2207 = vpop.f32.mrb[0].mxu0
        %v2208 = vadd.f32 %v1772, %v2207
        %v2209 = vpop.f32.mrb[0].mxu0
        %v2210 = vadd.f32 %v1776, %v2209
        %2211 = vdwg.mxu0
        %2212 = vmatprep.subr.bf16.mxu0 %v2004
        %2213 = vmatpush1.bf16.msra.mxu0 %v2003
        %2214 = vmatprep.subr.bf16.mxu0 %v2006
        %2215 = vmatpush1.bf16.msra.mxu0 %v2005
        %2216 = vmatprep.subr.bf16.mxu0 %v2008
        %2217 = vmatpush1.bf16.msra.mxu0 %v2007
        %2218 = vmatprep.subr.bf16.mxu0 %v2010
        %2219 = vmatpush1.bf16.msra.mxu0 %v2009
        %2220 = vmatprep.subr.bf16.mxu0 %v2012
        %2221 = vmatpush1.bf16.msra.mxu0 %v2011
        %2222 = vmatprep.subr.bf16.mxu0 %v2014
        %2223 = vmatpush1.bf16.msra.mxu0 %v2013
        %2224 = vmatprep.subr.bf16.mxu0 %v2016
        %2225 = vmatpush1.bf16.msra.mxu0 %v2015
        %2226 = vmatprep.subr.bf16.mxu0 %v2018
        %2227 = vmatpush1.bf16.msra.mxu0 %v2017
        %2228 = vmatprep.subr.bf16.mxu0 %v2020
        %2229 = vmatpush1.bf16.msra.mxu0 %v2019
        %2230 = vmatprep.subr.bf16.mxu0 %v2022
        %2231 = vmatpush1.bf16.msra.mxu0 %v2021
        %2232 = vmatprep.subr.bf16.mxu0 %v2024
        %2233 = vmatpush1.bf16.msra.mxu0 %v2023
        %2234 = vmatprep.subr.bf16.mxu0 %v2026
        %2235 = vmatpush1.bf16.msra.mxu0 %v2025
        %2236 = vmatprep.subr.bf16.mxu0 %v2028
        %2237 = vmatpush1.bf16.msra.mxu0 %v2027
        %2238 = vmatprep.subr.bf16.mxu0 %v2030
        %2239 = vmatpush1.bf16.msra.mxu0 %v2029
        %2240 = vmatprep.subr.bf16.mxu0 %v2032
        %2241 = vmatpush1.bf16.msra.mxu0 %v2031
        %2242 = vmatprep.subr.bf16.mxu0 %v2034
        %2243 = vmatpush1.bf16.msra.mxu0 %v2033
        %2244 = vmatprep.mubr.bf16.mxu0 %v1674
        %2245 = vmatmul.mubr.bf16.gmra.mrb[0].mxu0 %v1673
        %v2246 = vpop.f32.mrb[0].mxu0
        %v2247 = vadd.f32 %v2134, %v2246
        %v2248 = vpop.f32.mrb[0].mxu0
        %v2249 = vadd.f32 %v2136, %v2248
        %v2250 = vpop.f32.mrb[0].mxu0
        %v2251 = vadd.f32 %v2138, %v2250
        %v2252 = vpop.f32.mrb[0].mxu0
        %v2253 = vadd.f32 %v2140, %v2252
        %2254 = vmatprep.mubr.bf16.mxu0 %v1678
        %2255 = vmatmul.mubr.bf16.gmra.mrb[0].mxu0 %v1677
        %v2256 = vpop.f32.mrb[0].mxu0
        %v2257 = vadd.f32 %v2144, %v2256
        %v2258 = vpop.f32.mrb[0].mxu0
        %v2259 = vadd.f32 %v2146, %v2258
        %v2260 = vpop.f32.mrb[0].mxu0
        %v2261 = vadd.f32 %v2148, %v2260
        %v2262 = vpop.f32.mrb[0].mxu0
        %v2263 = vadd.f32 %v2150, %v2262
        %2264 = vmatprep.mubr.bf16.mxu0 %v1682
        %2265 = vmatmul.mubr.bf16.gmra.mrb[0].mxu0 %v1681
        %v2266 = vpop.f32.mrb[0].mxu0
        %v2267 = vadd.f32 %v2154, %v2266
        %v2268 = vpop.f32.mrb[0].mxu0
        %v2269 = vadd.f32 %v2156, %v2268
        %v2270 = vpop.f32.mrb[0].mxu0
        %v2271 = vadd.f32 %v2158, %v2270
        %v2272 = vpop.f32.mrb[0].mxu0
        %v2273 = vadd.f32 %v2160, %v2272
        %2274 = vmatprep.mubr.bf16.mxu0 %v1686
        %2275 = vmatmul.mubr.bf16.gmra.mrb[0].mxu0 %v1685
        %v2276 = vpop.f32.mrb[0].mxu0
        %v2277 = vadd.f32 %v2164, %v2276
        %v2278 = vpop.f32.mrb[0].mxu0
        %v2279 = vadd.f32 %v2166, %v2278
        %v2280 = vpop.f32.mrb[0].mxu0
        %v2281 = vadd.f32 %v2168, %v2280
        %v2282 = vpop.f32.mrb[0].mxu0
        %v2283 = vadd.f32 %v2170, %v2282
        %2284 = vmatprep.mubr.bf16.mxu0 %v1690
        %2285 = vmatmul.mubr.bf16.gmra.mrb[0].mxu0 %v1689
        %v2286 = vpop.f32.mrb[0].mxu0
        %v2287 = vadd.f32 %v2174, %v2286
        %v2288 = vpop.f32.mrb[0].mxu0
        %v2289 = vadd.f32 %v2176, %v2288
        %v2290 = vpop.f32.mrb[0].mxu0
        %v2291 = vadd.f32 %v2178, %v2290
        %v2292 = vpop.f32.mrb[0].mxu0
        %v2293 = vadd.f32 %v2180, %v2292
        %2294 = vmatprep.mubr.bf16.mxu0 %v1694
        %2295 = vmatmul.mubr.bf16.gmra.mrb[0].mxu0 %v1693
        %v2296 = vpop.f32.mrb[0].mxu0
        %v2297 = vadd.f32 %v2184, %v2296
        %v2298 = vpop.f32.mrb[0].mxu0
        %v2299 = vadd.f32 %v2186, %v2298
        %v2300 = vpop.f32.mrb[0].mxu0
        %v2301 = vadd.f32 %v2188, %v2300
        %v2302 = vpop.f32.mrb[0].mxu0
        %v2303 = vadd.f32 %v2190, %v2302
        %2304 = vmatprep.mubr.bf16.mxu0 %v1698
        %2305 = vmatmul.mubr.bf16.gmra.mrb[0].mxu0 %v1697
        %v2306 = vpop.f32.mrb[0].mxu0
        %v2307 = vadd.f32 %v2194, %v2306
        %v2308 = vpop.f32.mrb[0].mxu0
        %v2309 = vadd.f32 %v2196, %v2308
        %v2310 = vpop.f32.mrb[0].mxu0
        %v2311 = vadd.f32 %v2198, %v2310
        %v2312 = vpop.f32.mrb[0].mxu0
        %v2313 = vadd.f32 %v2200, %v2312
        %2314 = vmatprep.mubr.bf16.mxu0 %v1702
        %2315 = vmatmul.mubr.bf16.gmra.mrb[0].mxu0 %v1701
        %v2316 = vpop.f32.mrb[0].mxu0
        %v2317 = vadd.f32 %v2204, %v2316
        %v2318 = vpop.f32.mrb[0].mxu0
        %v2319 = vadd.f32 %v2206, %v2318
        %v2320 = vpop.f32.mrb[0].mxu0
        %v2321 = vadd.f32 %v2208, %v2320
        %v2322 = vpop.f32.mrb[0].mxu0
        %v2323 = vadd.f32 %v2210, %v2322
        %2324 = vdwg.mxu0
        %v2325 = vadd.f32 %v2247, %v2249
        %2326 = vadd.xlane.f32.xlu0 %v2325
        %v2327 = vpop.xlane.xlu0 %2326
        %v2328 = vadd.f32 %v2251, %v2253
        %2329 = vadd.xlane.f32.xlu0 %v2328
        %v2330 = vpop.xlane.xlu0 %2329
        %v2331 = vadd.f32 %v2257, %v2259
        %2332 = vadd.xlane.f32.xlu0 %v2331
        %v2333 = vpop.xlane.xlu0 %2332
        %v2334 = vadd.f32 %v2261, %v2263
        %2335 = vadd.xlane.f32.xlu0 %v2334
        %v2336 = vpop.xlane.xlu0 %2335
        %v2337 = vadd.f32 %v2267, %v2269
        %2338 = vadd.xlane.f32.xlu0 %v2337
        %v2339 = vpop.xlane.xlu0 %2338
        %v2340 = vadd.f32 %v2271, %v2273
        %2341 = vadd.xlane.f32.xlu0 %v2340
        %v2342 = vpop.xlane.xlu0 %2341
        %v2343 = vadd.f32 %v2277, %v2279
        %2344 = vadd.xlane.f32.xlu0 %v2343
        %v2345 = vpop.xlane.xlu0 %2344
        %v2346 = vadd.f32 %v2281, %v2283
        %2347 = vadd.xlane.f32.xlu0 %v2346
        %v2348 = vpop.xlane.xlu0 %2347
        %v2349 = vadd.f32 %v2287, %v2289
        %2350 = vadd.xlane.f32.xlu0 %v2349
        %v2351 = vpop.xlane.xlu0 %2350
        %v2352 = vadd.f32 %v2291, %v2293
        %2353 = vadd.xlane.f32.xlu0 %v2352
        %v2354 = vpop.xlane.xlu0 %2353
        %v2355 = vadd.f32 %v2297, %v2299
        %2356 = vadd.xlane.f32.xlu0 %v2355
        %v2357 = vpop.xlane.xlu0 %2356
        %v2358 = vadd.f32 %v2301, %v2303
        %2359 = vadd.xlane.f32.xlu0 %v2358
        %v2360 = vpop.xlane.xlu0 %2359
        %v2361 = vadd.f32 %v2307, %v2309
        %2362 = vadd.xlane.f32.xlu0 %v2361
        %v2363 = vpop.xlane.xlu0 %2362
        %v2364 = vadd.f32 %v2311, %v2313
        %2365 = vadd.xlane.f32.xlu0 %v2364
        %v2366 = vpop.xlane.xlu0 %2365
        %v2367 = vadd.f32 %v2317, %v2319
        %2368 = vadd.xlane.f32.xlu0 %v2367
        %v2369 = vpop.xlane.xlu0 %2368
        %v2370 = vadd.f32 %v2321, %v2323
        %2371 = vadd.xlane.f32.xlu0 %v2370
        %v2372 = vpop.xlane.xlu0 %2371
        %v2373 = vrcp.pop 256.0
        %v2374 = vmul.f32 %v2327, %v2373
        %v2375 = vmul.f32 %v2330, %v2373
        %v2376 = vmul.f32 %v2333, %v2373
        %v2377 = vmul.f32 %v2336, %v2373
        %v2378 = vmul.f32 %v2339, %v2373
        %v2379 = vmul.f32 %v2342, %v2373
        %v2380 = vmul.f32 %v2345, %v2373
        %v2381 = vmul.f32 %v2348, %v2373
        %v2382 = vmul.f32 %v2351, %v2373
        %v2383 = vmul.f32 %v2354, %v2373
        %v2384 = vmul.f32 %v2357, %v2373
        %v2385 = vmul.f32 %v2360, %v2373
        %v2386 = vmul.f32 %v2363, %v2373
        %v2387 = vmul.f32 %v2366, %v2373
        %v2388 = vmul.f32 %v2369, %v2373
        %v2389 = vmul.f32 %v2372, %v2373
        %v2390 = vsub.f32 %v2247, %v2374
        %v2391 = vsub.f32 %v2249, %v2374
        %v2392 = vsub.f32 %v2251, %v2375
        %v2393 = vsub.f32 %v2253, %v2375
        %v2394 = vsub.f32 %v2257, %v2376
        %v2395 = vsub.f32 %v2259, %v2376
        %v2396 = vsub.f32 %v2261, %v2377
        %v2397 = vsub.f32 %v2263, %v2377
        %v2398 = vsub.f32 %v2267, %v2378
        %v2399 = vsub.f32 %v2269, %v2378
        %v2400 = vsub.f32 %v2271, %v2379
        %v2401 = vsub.f32 %v2273, %v2379
        %v2402 = vsub.f32 %v2277, %v2380
        %v2403 = vsub.f32 %v2279, %v2380
        %v2404 = vsub.f32 %v2281, %v2381
        %v2405 = vsub.f32 %v2283, %v2381
        %v2406 = vsub.f32 %v2287, %v2382
        %v2407 = vsub.f32 %v2289, %v2382
        %v2408 = vsub.f32 %v2291, %v2383
        %v2409 = vsub.f32 %v2293, %v2383
        %v2410 = vsub.f32 %v2297, %v2384
        %v2411 = vsub.f32 %v2299, %v2384
        %v2412 = vsub.f32 %v2301, %v2385
        %v2413 = vsub.f32 %v2303, %v2385
        %v2414 = vsub.f32 %v2307, %v2386
        %v2415 = vsub.f32 %v2309, %v2386
        %v2416 = vsub.f32 %v2311, %v2387
        %v2417 = vsub.f32 %v2313, %v2387
        %v2418 = vsub.f32 %v2317, %v2388
        %v2419 = vsub.f32 %v2319, %v2388
        %v2420 = vsub.f32 %v2321, %v2389
        %v2421 = vsub.f32 %v2323, %v2389
        %v2422 = vmul.f32 %v2390, %v2390
        %v2423 = vmul.f32 %v2391, %v2391
        %v2424 = vmul.f32 %v2392, %v2392
        %v2425 = vmul.f32 %v2393, %v2393
        %v2426 = vmul.f32 %v2394, %v2394
        %v2427 = vmul.f32 %v2395, %v2395
        %v2428 = vmul.f32 %v2396, %v2396
        %v2429 = vmul.f32 %v2397, %v2397
        %v2430 = vmul.f32 %v2398, %v2398
        %v2431 = vmul.f32 %v2399, %v2399
        %v2432 = vmul.f32 %v2400, %v2400
        %v2433 = vmul.f32 %v2401, %v2401
        %v2434 = vmul.f32 %v2402, %v2402
        %v2435 = vmul.f32 %v2403, %v2403
        %v2436 = vmul.f32 %v2404, %v2404
        %v2437 = vmul.f32 %v2405, %v2405
        %v2438 = vmul.f32 %v2406, %v2406
        %v2439 = vmul.f32 %v2407, %v2407
        %v2440 = vmul.f32 %v2408, %v2408
        %v2441 = vmul.f32 %v2409, %v2409
        %v2442 = vmul.f32 %v2410, %v2410
        %v2443 = vmul.f32 %v2411, %v2411
        %v2444 = vmul.f32 %v2412, %v2412
        %v2445 = vmul.f32 %v2413, %v2413
        %v2446 = vmul.f32 %v2414, %v2414
        %v2447 = vmul.f32 %v2415, %v2415
        %v2448 = vmul.f32 %v2416, %v2416
        %v2449 = vmul.f32 %v2417, %v2417
        %v2450 = vmul.f32 %v2418, %v2418
        %v2451 = vmul.f32 %v2419, %v2419
        %v2452 = vmul.f32 %v2420, %v2420
        %v2453 = vmul.f32 %v2421, %v2421
        %v2454 = vadd.f32 %v2422, %v2423
        %2455 = vadd.xlane.f32.xlu0 %v2454
        %v2456 = vpop.xlane.xlu0 %2455
        %v2457 = vadd.f32 %v2424, %v2425
        %2458 = vadd.xlane.f32.xlu0 %v2457
        %v2459 = vpop.xlane.xlu0 %2458
        %v2460 = vadd.f32 %v2426, %v2427
        %2461 = vadd.xlane.f32.xlu0 %v2460
        %v2462 = vpop.xlane.xlu0 %2461
        %v2463 = vadd.f32 %v2428, %v2429
        %2464 = vadd.xlane.f32.xlu0 %v2463
        %v2465 = vpop.xlane.xlu0 %2464
        %v2466 = vadd.f32 %v2430, %v2431
        %2467 = vadd.xlane.f32.xlu0 %v2466
        %v2468 = vpop.xlane.xlu0 %2467
        %v2469 = vadd.f32 %v2432, %v2433
        %2470 = vadd.xlane.f32.xlu0 %v2469
        %v2471 = vpop.xlane.xlu0 %2470
        %v2472 = vadd.f32 %v2434, %v2435
        %2473 = vadd.xlane.f32.xlu0 %v2472
        %v2474 = vpop.xlane.xlu0 %2473
        %v2475 = vadd.f32 %v2436, %v2437
        %2476 = vadd.xlane.f32.xlu0 %v2475
        %v2477 = vpop.xlane.xlu0 %2476
        %v2478 = vadd.f32 %v2438, %v2439
        %2479 = vadd.xlane.f32.xlu0 %v2478
        %v2480 = vpop.xlane.xlu0 %2479
        %v2481 = vadd.f32 %v2440, %v2441
        %2482 = vadd.xlane.f32.xlu0 %v2481
        %v2483 = vpop.xlane.xlu0 %2482
        %v2484 = vadd.f32 %v2442, %v2443
        %2485 = vadd.xlane.f32.xlu0 %v2484
        %v2486 = vpop.xlane.xlu0 %2485
        %v2487 = vadd.f32 %v2444, %v2445
        %2488 = vadd.xlane.f32.xlu0 %v2487
        %v2489 = vpop.xlane.xlu0 %2488
        %v2490 = vadd.f32 %v2446, %v2447
        %2491 = vadd.xlane.f32.xlu0 %v2490
        %v2492 = vpop.xlane.xlu0 %2491
        %v2493 = vadd.f32 %v2448, %v2449
        %2494 = vadd.xlane.f32.xlu0 %v2493
        %v2495 = vpop.xlane.xlu0 %2494
        %v2496 = vadd.f32 %v2450, %v2451
        %2497 = vadd.xlane.f32.xlu0 %v2496
        %v2498 = vpop.xlane.xlu0 %2497
        %v2499 = vadd.f32 %v2452, %v2453
        %2500 = vadd.xlane.f32.xlu0 %v2499
        %v2501 = vpop.xlane.xlu0 %2500
        %v2502 = vmul.f32 %v2456, %v2373
        %v2503 = vmul.f32 %v2459, %v2373
        %v2504 = vmul.f32 %v2462, %v2373
        %v2505 = vmul.f32 %v2465, %v2373
        %v2506 = vmul.f32 %v2468, %v2373
        %v2507 = vmul.f32 %v2471, %v2373
        %v2508 = vmul.f32 %v2474, %v2373
        %v2509 = vmul.f32 %v2477, %v2373
        %v2510 = vmul.f32 %v2480, %v2373
        %v2511 = vmul.f32 %v2483, %v2373
        %v2512 = vmul.f32 %v2486, %v2373
        %v2513 = vmul.f32 %v2489, %v2373
        %v2514 = vmul.f32 %v2492, %v2373
        %v2515 = vmul.f32 %v2495, %v2373
        %v2516 = vmul.f32 %v2498, %v2373
        %v2517 = vmul.f32 %v2501, %v2373
        %v2518 = vadd.f32 %v2502, 1e-05
        %v2519 = vadd.f32 %v2503, 1e-05
        %v2520 = vadd.f32 %v2504, 1e-05
        %v2521 = vadd.f32 %v2505, 1e-05
        %v2522 = vadd.f32 %v2506, 1e-05
        %v2523 = vadd.f32 %v2507, 1e-05
        %v2524 = vadd.f32 %v2508, 1e-05
        %v2525 = vadd.f32 %v2509, 1e-05
        %v2526 = vadd.f32 %v2510, 1e-05
        %v2527 = vadd.f32 %v2511, 1e-05
        %v2528 = vadd.f32 %v2512, 1e-05
        %v2529 = vadd.f32 %v2513, 1e-05
        %v2530 = vadd.f32 %v2514, 1e-05
        %v2531 = vadd.f32 %v2515, 1e-05
        %v2532 = vadd.f32 %v2516, 1e-05
        %v2533 = vadd.f32 %v2517, 1e-05
        %v2534 = vrsqrt.pop %v2518
        %v2535 = vrsqrt.pop %v2519
        %v2536 = vrsqrt.pop %v2520
        %v2537 = vrsqrt.pop %v2521
        %v2538 = vrsqrt.pop %v2522
        %v2539 = vrsqrt.pop %v2523
        %v2540 = vrsqrt.pop %v2524
        %v2541 = vrsqrt.pop %v2525
        %v2542 = vrsqrt.pop %v2526
        %v2543 = vrsqrt.pop %v2527
        %v2544 = vrsqrt.pop %v2528
        %v2545 = vrsqrt.pop %v2529
        %v2546 = vrsqrt.pop %v2530
        %v2547 = vrsqrt.pop %v2531
        %v2548 = vrsqrt.pop %v2532
        %v2549 = vrsqrt.pop %v2533
        %v2550 = vmul.f32 %v2390, %v2534
        %v2551 = vmul.f32 %v2391, %v2534
        %v2552 = vmul.f32 %v2392, %v2535
        %v2553 = vmul.f32 %v2393, %v2535
        %v2554 = vmul.f32 %v2394, %v2536
        %v2555 = vmul.f32 %v2395, %v2536
        %v2556 = vmul.f32 %v2396, %v2537
        %v2557 = vmul.f32 %v2397, %v2537
        %v2558 = vmul.f32 %v2398, %v2538
        %v2559 = vmul.f32 %v2399, %v2538
        %v2560 = vmul.f32 %v2400, %v2539
        %v2561 = vmul.f32 %v2401, %v2539
        %v2562 = vmul.f32 %v2402, %v2540
        %v2563 = vmul.f32 %v2403, %v2540
        %v2564 = vmul.f32 %v2404, %v2541
        %v2565 = vmul.f32 %v2405, %v2541
        %v2566 = vmul.f32 %v2406, %v2542
        %v2567 = vmul.f32 %v2407, %v2542
        %v2568 = vmul.f32 %v2408, %v2543
        %v2569 = vmul.f32 %v2409, %v2543
        %v2570 = vmul.f32 %v2410, %v2544
        %v2571 = vmul.f32 %v2411, %v2544
        %v2572 = vmul.f32 %v2412, %v2545
        %v2573 = vmul.f32 %v2413, %v2545
        %v2574 = vmul.f32 %v2414, %v2546
        %v2575 = vmul.f32 %v2415, %v2546
        %v2576 = vmul.f32 %v2416, %v2547
        %v2577 = vmul.f32 %v2417, %v2547
        %v2578 = vmul.f32 %v2418, %v2548
        %v2579 = vmul.f32 %v2419, %v2548
        %v2580 = vmul.f32 %v2420, %v2549
        %v2581 = vmul.f32 %v2421, %v2549
        %s2582 = scalar_lea.vmem %s4, 1
        %v2583 = vld [vmem:[%s2582] ss:$4 sm:$0x3]
        %v2585 = vlaneseq
        %v2586 = vshrl.u32 %v2585, 7
        %v2587 = vsub.s32 0, %v2586
        %v2588 = vrot.slane %v2583, %v2587
        %v2589 = vlaneseq
        %v2590 = vshrl.u32 %v2589, 7
        %v2591 = vsub.s32 1, %v2590
        %v2592 = vrot.slane %v2583, %v2591
        %v2595 = vmul.f32 %v2550, %v2588
        %v2596 = vmul.f32 %v2551, %v2592
        %v2597 = vmul.f32 %v2552, %v2588
        %v2598 = vmul.f32 %v2553, %v2592
        %v2599 = vmul.f32 %v2554, %v2588
        %v2600 = vmul.f32 %v2555, %v2592
        %v2601 = vmul.f32 %v2556, %v2588
        %v2602 = vmul.f32 %v2557, %v2592
        %v2603 = vmul.f32 %v2558, %v2588
        %v2604 = vmul.f32 %v2559, %v2592
        %v2605 = vmul.f32 %v2560, %v2588
        %v2606 = vmul.f32 %v2561, %v2592
        %v2607 = vmul.f32 %v2562, %v2588
        %v2608 = vmul.f32 %v2563, %v2592
        %v2609 = vmul.f32 %v2564, %v2588
        %v2610 = vmul.f32 %v2565, %v2592
        %v2611 = vmul.f32 %v2566, %v2588
        %v2612 = vmul.f32 %v2567, %v2592
        %v2613 = vmul.f32 %v2568, %v2588
        %v2614 = vmul.f32 %v2569, %v2592
        %v2615 = vmul.f32 %v2570, %v2588
        %v2616 = vmul.f32 %v2571, %v2592
        %v2617 = vmul.f32 %v2572, %v2588
        %v2618 = vmul.f32 %v2573, %v2592
        %v2619 = vmul.f32 %v2574, %v2588
        %v2620 = vmul.f32 %v2575, %v2592
        %v2621 = vmul.f32 %v2576, %v2588
        %v2622 = vmul.f32 %v2577, %v2592
        %v2623 = vmul.f32 %v2578, %v2588
        %v2624 = vmul.f32 %v2579, %v2592
        %v2625 = vmul.f32 %v2580, %v2588
        %v2626 = vmul.f32 %v2581, %v2592
        %s2627 = scalar_lea.vmem %s4, 2
        %v2628 = vld [vmem:[%s2627] ss:$4 sm:$0x3]
        %v2630 = vlaneseq
        %v2631 = vshrl.u32 %v2630, 7
        %v2632 = vsub.s32 0, %v2631
        %v2633 = vrot.slane %v2628, %v2632
        %v2634 = vlaneseq
        %v2635 = vshrl.u32 %v2634, 7
        %v2636 = vsub.s32 1, %v2635
        %v2637 = vrot.slane %v2628, %v2636
        %v2640 = vadd.f32 %v2595, %v2633
        %v2641 = vadd.f32 %v2596, %v2637
        %v2642 = vadd.f32 %v2597, %v2633
        %v2643 = vadd.f32 %v2598, %v2637
        %v2644 = vadd.f32 %v2599, %v2633
        %v2645 = vadd.f32 %v2600, %v2637
        %v2646 = vadd.f32 %v2601, %v2633
        %v2647 = vadd.f32 %v2602, %v2637
        %v2648 = vadd.f32 %v2603, %v2633
        %v2649 = vadd.f32 %v2604, %v2637
        %v2650 = vadd.f32 %v2605, %v2633
        %v2651 = vadd.f32 %v2606, %v2637
        %v2652 = vadd.f32 %v2607, %v2633
        %v2653 = vadd.f32 %v2608, %v2637
        %v2654 = vadd.f32 %v2609, %v2633
        %v2655 = vadd.f32 %v2610, %v2637
        %v2656 = vadd.f32 %v2611, %v2633
        %v2657 = vadd.f32 %v2612, %v2637
        %v2658 = vadd.f32 %v2613, %v2633
        %v2659 = vadd.f32 %v2614, %v2637
        %v2660 = vadd.f32 %v2615, %v2633
        %v2661 = vadd.f32 %v2616, %v2637
        %v2662 = vadd.f32 %v2617, %v2633
        %v2663 = vadd.f32 %v2618, %v2637
        %v2664 = vadd.f32 %v2619, %v2633
        %v2665 = vadd.f32 %v2620, %v2637
        %v2666 = vadd.f32 %v2621, %v2633
        %v2667 = vadd.f32 %v2622, %v2637
        %v2668 = vadd.f32 %v2623, %v2633
        %v2669 = vadd.f32 %v2624, %v2637
        %v2670 = vadd.f32 %v2625, %v2633
        %v2671 = vadd.f32 %v2626, %v2637
        %v2672 = vmax.f32 %v2640, 0.0
        %v2673 = vmax.f32 %v2641, 0.0
        %v2674 = vmax.f32 %v2642, 0.0
        %v2675 = vmax.f32 %v2643, 0.0
        %v2676 = vmax.f32 %v2644, 0.0
        %v2677 = vmax.f32 %v2645, 0.0
        %v2678 = vmax.f32 %v2646, 0.0
        %v2679 = vmax.f32 %v2647, 0.0
        %v2680 = vmax.f32 %v2648, 0.0
        %v2681 = vmax.f32 %v2649, 0.0
        %v2682 = vmax.f32 %v2650, 0.0
        %v2683 = vmax.f32 %v2651, 0.0
        %v2684 = vmax.f32 %v2652, 0.0
        %v2685 = vmax.f32 %v2653, 0.0
        %v2686 = vmax.f32 %v2654, 0.0
        %v2687 = vmax.f32 %v2655, 0.0
        %v2688 = vmax.f32 %v2656, 0.0
        %v2689 = vmax.f32 %v2657, 0.0
        %v2690 = vmax.f32 %v2658, 0.0
        %v2691 = vmax.f32 %v2659, 0.0
        %v2692 = vmax.f32 %v2660, 0.0
        %v2693 = vmax.f32 %v2661, 0.0
        %v2694 = vmax.f32 %v2662, 0.0
        %v2695 = vmax.f32 %v2663, 0.0
        %v2696 = vmax.f32 %v2664, 0.0
        %v2697 = vmax.f32 %v2665, 0.0
        %v2698 = vmax.f32 %v2666, 0.0
        %v2699 = vmax.f32 %v2667, 0.0
        %v2700 = vmax.f32 %v2668, 0.0
        %v2701 = vmax.f32 %v2669, 0.0
        %v2702 = vmax.f32 %v2670, 0.0
        %v2703 = vmax.f32 %v2671, 0.0
        %v2704 = vpack.c.bf16 %v2674, %v2672
        %v2705 = vpack.c.bf16 %v2675, %v2673
        %v2706 = vpack.c.bf16 %v2678, %v2676
        %v2707 = vpack.c.bf16 %v2679, %v2677
        %v2708 = vpack.c.bf16 %v2682, %v2680
        %v2709 = vpack.c.bf16 %v2683, %v2681
        %v2710 = vpack.c.bf16 %v2686, %v2684
        %v2711 = vpack.c.bf16 %v2687, %v2685
        %v2712 = vpack.c.bf16 %v2690, %v2688
        %v2713 = vpack.c.bf16 %v2691, %v2689
        %v2714 = vpack.c.bf16 %v2694, %v2692
        %v2715 = vpack.c.bf16 %v2695, %v2693
        %v2716 = vpack.c.bf16 %v2698, %v2696
        %v2717 = vpack.c.bf16 %v2699, %v2697
        %v2718 = vpack.c.bf16 %v2702, %v2700
        %v2719 = vpack.c.bf16 %v2703, %v2701
        %v2736 = vunpack.c.l.b16 %v2704
        %v2737 = vunpack.c.l.b16 %v2705
        %v2738 = vunpack.c.h.b16 %v2704
        %v2739 = vunpack.c.h.b16 %v2705
        %v2740 = vunpack.c.l.b16 %v2706
        %v2741 = vunpack.c.l.b16 %v2707
        %v2742 = vunpack.c.h.b16 %v2706
        %v2743 = vunpack.c.h.b16 %v2707
        %v2744 = vunpack.c.l.b16 %v2708
        %v2745 = vunpack.c.l.b16 %v2709
        %v2746 = vunpack.c.h.b16 %v2708
        %v2747 = vunpack.c.h.b16 %v2709
        %v2748 = vunpack.c.l.b16 %v2710
        %v2749 = vunpack.c.l.b16 %v2711
        %v2750 = vunpack.c.h.b16 %v2710
        %v2751 = vunpack.c.h.b16 %v2711
        %v2752 = vunpack.c.l.b16 %v2712
        %v2753 = vunpack.c.l.b16 %v2713
        %v2754 = vunpack.c.h.b16 %v2712
        %v2755 = vunpack.c.h.b16 %v2713
        %v2756 = vunpack.c.l.b16 %v2714
        %v2757 = vunpack.c.l.b16 %v2715
        %v2758 = vunpack.c.h.b16 %v2714
        %v2759 = vunpack.c.h.b16 %v2715
        %v2760 = vunpack.c.l.b16 %v2716
        %v2761 = vunpack.c.l.b16 %v2717
        %v2762 = vunpack.c.h.b16 %v2716
        %v2763 = vunpack.c.h.b16 %v2717
        %v2764 = vunpack.c.l.b16 %v2718
        %v2765 = vunpack.c.l.b16 %v2719
        %v2766 = vunpack.c.h.b16 %v2718
        %v2767 = vunpack.c.h.b16 %v2719
        %v2768 = vpack.c.b16 %v2737, %v2736
        %v2769 = vpack.c.b16 %v2739, %v2738
        %v2770 = vpack.c.b16 %v2741, %v2740
        %v2771 = vpack.c.b16 %v2743, %v2742
        %v2772 = vpack.c.b16 %v2745, %v2744
        %v2773 = vpack.c.b16 %v2747, %v2746
        %v2774 = vpack.c.b16 %v2749, %v2748
        %v2775 = vpack.c.b16 %v2751, %v2750
        %v2776 = vpack.c.b16 %v2753, %v2752
        %v2777 = vpack.c.b16 %v2755, %v2754
        %v2778 = vpack.c.b16 %v2757, %v2756
        %v2779 = vpack.c.b16 %v2759, %v2758
        %v2780 = vpack.c.b16 %v2761, %v2760
        %v2781 = vpack.c.b16 %v2763, %v2762
        %v2782 = vpack.c.b16 %v2765, %v2764
        %v2783 = vpack.c.b16 %v2767, %v2766
        %2800 = vst [vmem:[%s285] sm:$0xff] %v2768
        %2801 = vst [vmem:[%s285 + $0x8] sm:$0xff] %v2769
        %2802 = vst [vmem:[%s285 + $0x10] sm:$0xff] %v2770
        %2803 = vst [vmem:[%s285 + $0x18] sm:$0xff] %v2771
        %2804 = vst [vmem:[%s285 + $0x20] sm:$0xff] %v2772
        %2805 = vst [vmem:[%s285 + $0x28] sm:$0xff] %v2773
        %2806 = vst [vmem:[%s285 + $0x30] sm:$0xff] %v2774
        %2807 = vst [vmem:[%s285 + $0x38] sm:$0xff] %v2775
        %2808 = vst [vmem:[%s285 + $0x40] sm:$0xff] %v2776
        %2809 = vst [vmem:[%s285 + $0x48] sm:$0xff] %v2777
        %2810 = vst [vmem:[%s285 + $0x50] sm:$0xff] %v2778
        %2811 = vst [vmem:[%s285 + $0x58] sm:$0xff] %v2779
        %2812 = vst [vmem:[%s285 + $0x60] sm:$0xff] %v2780
        %2813 = vst [vmem:[%s285 + $0x68] sm:$0xff] %v2781
        %2814 = vst [vmem:[%s285 + $0x70] sm:$0xff] %v2782
        %2815 = vst [vmem:[%s285 + $0x78] sm:$0xff] %v2783
        %s2816 = sand.u32 %s142, 1
        %s2817 = scalar_lea.sflag [#allocation4], %s2816
        %s2818 = sand.u32 %s142, 1
        %s2819 = smul.addr %s2818, 128
        %s2820 = scalar_lea.vmem [#allocation10], %s2819
        // Predicated region
        $region57: #{text_embed_encoder_forward.1} parent=39 // pred_check
          %p2821 = pneg %p152
        $region58: #{text_embed_encoder_forward.1} parent=39 // pred_check_branch
          %2823 = sbr.rel (%p2821) target = $region60
        $region59: #{text_embed_encoder_forward.1} parent=39 // pred_region
          %s2824 = smul.u32 16, %s24
          %s2826 = ssub.s32 2048, 2048
          %2827 = vsyncadd %s2817, %s2826
          %s2828 = smul.addr %s2824, 2
          %s2829 = smul.addr %s2828, 64
          %s2830 = scalar_lea.hbm %s5, %s2829
          %s2831 = sshll.u32 %s2820, 4
          %s2832 = int_to_ptr.vmem [resolvable:$true] %s2831
          %2837 = dma.vmem_to_hbm [thread:$0]  %s2832, 2048, %s2830, %s2817, 128, 128, 8
        $region60: #{text_embed_encoder_forward.1} parent=39 // pred_fallthru
          _
      $region40: #{text_embed_encoder_forward.1} parent=5 // pred_fallthru
        _
      %p2838 = scmp.le.s32.totalorder 2, %s19
      // Predicated region
      $region61: #{text_embed_encoder_forward.1} parent=5 // pred_check
        %p2839 = pneg %p2838
      $region62: #{text_embed_encoder_forward.1} parent=5 // pred_check_branch
        %2841 = sbr.rel (%p2839) target = $region64
      $region63: #{text_embed_encoder_forward.1} parent=5 // pred_region
        %s2842 = ssub.s32 %s19, 2
        // Predicated region
        $region65: #{text_embed_encoder_forward.1} parent=63 // pred_check
          %p2843 = pneg %p158
        $region66: #{text_embed_encoder_forward.1} parent=63 // pred_check_branch
          %2845 = sbr.rel (%p2843) target = $region68
        $region67: #{text_embed_encoder_forward.1} parent=63 // pred_region
          %s2846 = sand.u32 %s143, 1
          %s2847 = scalar_lea.sflag [#allocation4], %s2846
          %s2848 = sand.u32 %s143, 1
          %s2849 = smul.addr %s2848, 128
          %s2850 = scalar_lea.vmem [#allocation10], %s2849
          %2851 = dma.done %s2847, 2048
        $region68: #{text_embed_encoder_forward.1} parent=63 // pred_fallthru
          _
      $region64: #{text_embed_encoder_forward.1} parent=5 // pred_fallthru
        _
    $region6: #{text_embed_encoder_forward.1} parent=1 // loop_footer
      %s23 = sadd.s32 1, %s19
    $region7: #{text_embed_encoder_forward.1} parent=1 // loop_footer_branch
      %18 = sbr.rel target = $region3
    $region8: #{text_embed_encoder_forward.1} parent=1 // loop_exit
      _
    %2852 = vsyncpa [#allocation3], 1
    %s2853 = scalar_lea.sflag [#allocation3], 1
    %2854 = vsyncpa %s2853, 1
    %2855 = vsyncpa [#allocation6], 1
    %2856 = vsyncpa [#allocation9], 1
    %2857 = vsyncpa [#allocation4], 1
    %s2858 = scalar_lea.sflag [#allocation4], 1
    %2859 = vsyncpa %s2858, 1

</llo_original>
